<compile_context>
chip_gen: v6e
topology: v6e:2x2x1
jax: 0.10.0
libtpu: 0.0.40
codegen_flags: <defaults>
</compile_context>

<pallas_src>
import functools

import jax
import jax.numpy as jnp
from jax import lax
from jax.experimental import pallas as pl
from jax.experimental.pallas import tpu as pltpu

_LANE = 128
_NEG_SLOPE = 0.1


def _round_up(x, m):
    return (x + m - 1) // m * m


# ------------------------------ Pallas kernel -------------------------------
def _conv_taps_lrelu_kernel(x_ref, w_ref, b_ref, o_ref, *, kh, kw, ho, wo):
    """One (batch image, Cout tile) of a stride-1 multi-tap conv + LeakyReLU.

    x_ref: (1, Hp, Wp, Cin)   bf16   with Hp >= ho + kh - 1, Wp >= wo + kw - 1
    w_ref: (kh*kw, Cin, TC)   bf16   per-tap (Cin, TC) weight slabs
    b_ref: (1, TC)            f32
    o_ref: (1, ho*wo, TC)     bf16 or f32 (lane-dense, TC >= 128)
    """
    tc = o_ref.shape[-1]
    cin = x_ref.shape[-1]
    acc = jnp.zeros((ho * wo, tc), jnp.float32)
    for di in range(kh):
        for dj in range(kw):
            x_tap = x_ref[0, di:di + ho, dj:dj + wo, :]      # (ho, wo, Cin)
            x_tap = x_tap.reshape(ho * wo, cin)              # (ho*wo, Cin)
            acc += jnp.dot(x_tap, w_ref[di * kw + dj],
                           preferred_element_type=jnp.float32)
    acc = acc + b_ref[...]                                   # (1, TC) broadcast
    # LeakyReLU(0.1) in f32 on the accumulator.
    o_ref[0] = jnp.maximum(acc, _NEG_SLOPE * acc).astype(o_ref.dtype)


def _conv_taps_lrelu(x, w, b, *, kh, kw, ho, wo, out_dtype):
    """x: (N, Hp, Wp, Cin); w: (kh*kw, Cin, Cpad); b: (1, Cpad) f32.

    Returns (N, ho*wo, Cpad) in out_dtype.
    """
    n, hp, wp, cin = x.shape
    taps, cin_w, cpad = w.shape
    assert taps == kh * kw and cin_w == cin and cpad % _LANE == 0

    # Feed the 256-wide v6e/v7x MXU when the channel count allows it.
    tc = 256 if cpad % 256 == 0 else _LANE
    grid = (n, cpad // tc)

    flops = 2 * n * ho * wo * cin * cpad * taps
    bytes_accessed = (x.size * x.dtype.itemsize
                      + w.size * w.dtype.itemsize
                      + b.size * b.dtype.itemsize
                      + n * ho * wo * cpad * jnp.dtype(out_dtype).itemsize)

    kernel = functools.partial(_conv_taps_lrelu_kernel,
                               kh=kh, kw=kw, ho=ho, wo=wo)
    return pl.pallas_call(
        kernel,
        out_shape=jax.ShapeDtypeStruct((n, ho * wo, cpad), out_dtype),
        grid_spec=pltpu.PrefetchScalarGridSpec(
            num_scalar_prefetch=0,
            grid=grid,
            in_specs=[
                pl.BlockSpec((1, hp, wp, cin), lambda i, c: (i, 0, 0, 0)),
                pl.BlockSpec((taps, cin, tc), lambda i, c: (0, 0, c)),
                pl.BlockSpec((1, tc), lambda i, c: (0, c)),
            ],
            out_specs=pl.BlockSpec((1, ho * wo, tc), lambda i, c: (i, 0, c)),
        ),
        compiler_params=pltpu.CompilerParams(
            dimension_semantics=("parallel", "parallel"),
            vmem_limit_bytes=48 * 1024 * 1024,
        ),
        cost_estimate=pl.CostEstimate(
            flops=flops, transcendentals=0, bytes_accessed=bytes_accessed),
    )(x, w, b)


# ------------------------------ layout glue ---------------------------------
def _space_to_depth(xp):
    """(N, Hp, Wp, C) with Hp, Wp even -> (N, Hp//2, Wp//2, 4*C).

    New channel index = (a*2 + b)*C + c where (a, b) is the position inside
    each 2x2 cell, i.e. out[n, r, s, (a*2+b)*C + c] = xp[n, 2r+a, 2s+b, c].
    """
    n, hp, wp, c = xp.shape
    xs = xp.reshape(n, hp // 2, 2, wp // 2, 2, c)
    xs = jnp.transpose(xs, (0, 1, 3, 2, 4, 5))
    return xs.reshape(n, hp // 2, wp // 2, 4 * c)


def _conv1_weight(w1, cpad):
    """PyTorch (Cout, Cin, 4, 4) -> (4 taps, 4*Cin, cpad) matching s2d order.

    Tap index = di*2 + dj, row index = (a*2 + b)*Cin + ci with i = 2*di + a,
    j = 2*dj + b.
    """
    cout, cin, _, _ = w1.shape
    w = jnp.transpose(w1, (2, 3, 1, 0))            # (4, 4, Cin, Cout) [i,j,ci,co]
    w = w.reshape(2, 2, 2, 2, cin, cout)           # [di, a, dj, b, ci, co]
    w = jnp.transpose(w, (0, 2, 1, 3, 4, 5))       # [di, dj, a, b, ci, co]
    w = w.reshape(4, 4 * cin, cout)
    return jnp.pad(w, ((0, 0), (0, 0), (0, cpad - cout)))


def _conv2_weight(w2, cpad):
    """PyTorch (Cout, Cout, 3, 3) -> (9, cpad, cpad), zero pad on both dims."""
    cout, cin, _, _ = w2.shape
    w = jnp.transpose(w2, (2, 3, 1, 0)).reshape(9, cin, cout)   # tap = i*3 + j
    return jnp.pad(w, ((0, 0), (0, cpad - cin), (0, cpad - cout)))


def _pad_bias(b, cpad):
    return jnp.pad(b, (0, cpad - b.shape[0])).reshape(1, cpad).astype(jnp.float32)


# -------------------------------- DownBlock ---------------------------------
def down_block_forward(x_nchw, params, *, compute_dtype=jnp.bfloat16):
    """x_nchw: (N, Cin, H, W) f32 -> (N, Cout, H//2, W//2) f32."""
    w1, b1, w2, b2 = params["w1"], params["b1"], params["w2"], params["b2"]
    n, cin, h, w = x_nchw.shape
    cout = w1.shape[0]
    assert h % 2 == 0 and w % 2 == 0, "DownBlock expects even spatial dims"
    ho, wo = h // 2, w // 2
    cpad = _round_up(cout, _LANE)

    # NCHW interface kept to match PyTorch; layout glue stays in plain JAX.
    x = jnp.transpose(x_nchw, (0, 2, 3, 1))                       # NHWC
    xp = jnp.pad(x, ((0, 0), (1, 1), (1, 1), (0, 0)))             # pad = 1
    xs = _space_to_depth(xp).astype(compute_dtype)                # (N, ho+1, wo+1, 4*Cin)

    # Conv2d(Cin, Cout, 4, 2, 1) + LeakyReLU(0.1), as a 2x2 stride-1 conv.
    w1m = _conv1_weight(w1, cpad).astype(compute_dtype)
    y1 = _conv_taps_lrelu(xs, w1m, _pad_bias(b1, cpad),
                          kh=2, kw=2, ho=ho, wo=wo, out_dtype=compute_dtype)
    y1 = y1.reshape(n, ho, wo, cpad)                              # padded channels kept

    # Conv2d(Cout, Cout, 3, 1, 1) + LeakyReLU(0.1).
    y1p = jnp.pad(y1, ((0, 0), (1, 1), (1, 1), (0, 0)))
    w2m = _conv2_weight(w2, cpad).astype(compute_dtype)
    y2 = _conv_taps_lrelu(y1p, w2m, _pad_bias(b2, cpad),
                          kh=3, kw=3, ho=ho, wo=wo, out_dtype=jnp.float32)
    y2 = y2.reshape(n, ho, wo, cpad)[..., :cout]

    return jnp.transpose(y2, (0, 3, 1, 2))                        # back to NCHW


def init_params(key, inchannels, outchannels):
    k1, k2, k3, k4 = jax.random.split(key, 4)
    s1 = 1.0 / jnp.sqrt(inchannels * 4 * 4)
    s2 = 1.0 / jnp.sqrt(outchannels * 3 * 3)
    return {
        "w1": jax.random.uniform(k1, (outchannels, inchannels, 4, 4),
                                 jnp.float32, -s1, s1),
        "b1": jax.random.uniform(k2, (outchannels,), jnp.float32, -s1, s1),
        "w2": jax.random.uniform(k3, (outchannels, outchannels, 3, 3),
                                 jnp.float32, -s2, s2),
        "b2": jax.random.uniform(k4, (outchannels,), jnp.float32, -s2, s2),
    }


# ------------------------------ reference (JAX) ------------------------------
def _reference(x_nchw, params):
    def conv(x, w, b, stride, pad):
        y = lax.conv_general_dilated(
            x, w, window_strides=(stride, stride),
            padding=[(pad, pad), (pad, pad)],
            dimension_numbers=("NCHW", "OIHW", "NCHW"))
        return y + b.reshape(1, -1, 1, 1)

    def lrelu(x):
        return jnp.where(x > 0, x, 0.1 * x)

    y = lrelu(conv(x_nchw, params["w1"], params["b1"], 2, 1))
    y = lrelu(conv(y, params["w2"], params["b2"], 1, 1))
    return y


if __name__ == "__main__":
    key = jax.random.PRNGKey(0)
    kx, kp = jax.random.split(key)

    N, Cin, Cout, H, W = 2, 4, 8, 16, 16
    x = jax.random.normal(kx, (N, Cin, H, W), jnp.float32)
    params = init_params(kp, Cin, Cout)

    fwd = jax.jit(functools.partial(down_block_forward, params=params))
    out = fwd(x)
    jax.block_until_ready(out)

    assert out.shape == (N, Cout, H // 2, W // 2), out.shape

    # bf16 MXU inputs -> compare against f32 reference with a bf16 tolerance.
    ref = _reference(x, params)
    err = float(jnp.max(jnp.abs(out - ref)))
    assert jnp.allclose(out, ref, atol=5e-2, rtol=5e-2), err

    print("KERNEL_OK")
</pallas_src>

<mosaic_0001>
module attributes {stable_mosaic.version = 11 : i64} {
  func.func @_conv_taps_lrelu_kernel(%arg0: i32, %arg1: i32, %arg2: memref<1x9x9x16xbf16, #tpu.memory_space<vmem>>, %arg3: memref<4x16x128xbf16, #tpu.memory_space<vmem>>, %arg4: memref<1x128xf32, #tpu.memory_space<vmem>>, %arg5: memref<1x64x128xbf16, #tpu.memory_space<vmem>>) attributes {dimension_semantics = [#tpu.dimension_semantics<parallel>, #tpu.dimension_semantics<parallel>], iteration_bounds = array<i64: 2, 1>, scalar_prefetch = 0 : i64, scratch_operands = 0 : i64, tpu.core_type = #tpu.core_type<tc>, window_params = [{transform_indices = @transform_0, window_bounds = array<i64: 1, 9, 9, 16>}, {transform_indices = @transform_1, window_bounds = array<i64: 4, 16, 128>}, {transform_indices = @transform_2, window_bounds = array<i64: 1, 128>}, {transform_indices = @transform_3, window_bounds = array<i64: 1, 64, 128>}]} {
    %cst = arith.constant 0.000000e+00 : f32
    %0 = vector.broadcast %cst : f32 to vector<64x128xf32>
    %c0 = arith.constant 0 : index
    %c0_0 = arith.constant 0 : index
    %c0_1 = arith.constant 0 : index
    %c0_2 = arith.constant 0 : index
    %1 = vector.load %arg2[%c0, %c0_0, %c0_1, %c0_2] : memref<1x9x9x16xbf16, #tpu.memory_space<vmem>>, vector<1x8x8x16xbf16>
    %2 = vector.shape_cast %1 : vector<1x8x8x16xbf16> to vector<8x8x16xbf16>
    %3 = vector.shape_cast %2 : vector<8x8x16xbf16> to vector<64x16xbf16>
    %c0_3 = arith.constant 0 : index
    %c0_4 = arith.constant 0 : index
    %c0_5 = arith.constant 0 : index
    %4 = vector.load %arg3[%c0_3, %c0_4, %c0_5] : memref<4x16x128xbf16, #tpu.memory_space<vmem>>, vector<1x16x128xbf16>
    %5 = vector.shape_cast %4 : vector<1x16x128xbf16> to vector<16x128xbf16>
    %cst_6 = arith.constant dense<0.000000e+00> : vector<64x128xf32>
    %6 = tpu.matmul %3, %5, %cst_6 {dimension_numbers = #tpu.dot_dimension_numbers<[1], [0], [0], [1], [0, 0, 1, 1], [], []>} : vector<64x16xbf16>, vector<16x128xbf16>, vector<64x128xf32> -> vector<64x128xf32>
    %7 = arith.addf %0, %6 : vector<64x128xf32>
    %c0_7 = arith.constant 0 : index
    %c0_8 = arith.constant 0 : index
    %c1 = arith.constant 1 : index
    %c0_9 = arith.constant 0 : index
    %8 = vector.load %arg2[%c0_7, %c0_8, %c1, %c0_9] : memref<1x9x9x16xbf16, #tpu.memory_space<vmem>>, vector<1x8x8x16xbf16>
    %9 = vector.shape_cast %8 : vector<1x8x8x16xbf16> to vector<8x8x16xbf16>
    %10 = vector.shape_cast %9 : vector<8x8x16xbf16> to vector<64x16xbf16>
    %c1_10 = arith.constant 1 : index
    %c0_11 = arith.constant 0 : index
    %c0_12 = arith.constant 0 : index
    %11 = vector.load %arg3[%c1_10, %c0_11, %c0_12] : memref<4x16x128xbf16, #tpu.memory_space<vmem>>, vector<1x16x128xbf16>
    %12 = vector.shape_cast %11 : vector<1x16x128xbf16> to vector<16x128xbf16>
    %cst_13 = arith.constant dense<0.000000e+00> : vector<64x128xf32>
    %13 = tpu.matmul %10, %12, %cst_13 {dimension_numbers = #tpu.dot_dimension_numbers<[1], [0], [0], [1], [0, 0, 1, 1], [], []>} : vector<64x16xbf16>, vector<16x128xbf16>, vector<64x128xf32> -> vector<64x128xf32>
    %14 = arith.addf %7, %13 : vector<64x128xf32>
    %c0_14 = arith.constant 0 : index
    %c1_15 = arith.constant 1 : index
    %c0_16 = arith.constant 0 : index
    %c0_17 = arith.constant 0 : index
    %15 = vector.load %arg2[%c0_14, %c1_15, %c0_16, %c0_17] : memref<1x9x9x16xbf16, #tpu.memory_space<vmem>>, vector<1x8x8x16xbf16>
    %16 = vector.shape_cast %15 : vector<1x8x8x16xbf16> to vector<8x8x16xbf16>
    %17 = vector.shape_cast %16 : vector<8x8x16xbf16> to vector<64x16xbf16>
    %c2 = arith.constant 2 : index
    %c0_18 = arith.constant 0 : index
    %c0_19 = arith.constant 0 : index
    %18 = vector.load %arg3[%c2, %c0_18, %c0_19] : memref<4x16x128xbf16, #tpu.memory_space<vmem>>, vector<1x16x128xbf16>
    %19 = vector.shape_cast %18 : vector<1x16x128xbf16> to vector<16x128xbf16>
    %cst_20 = arith.constant dense<0.000000e+00> : vector<64x128xf32>
    %20 = tpu.matmul %17, %19, %cst_20 {dimension_numbers = #tpu.dot_dimension_numbers<[1], [0], [0], [1], [0, 0, 1, 1], [], []>} : vector<64x16xbf16>, vector<16x128xbf16>, vector<64x128xf32> -> vector<64x128xf32>
    %21 = arith.addf %14, %20 : vector<64x128xf32>
    %c0_21 = arith.constant 0 : index
    %c1_22 = arith.constant 1 : index
    %c1_23 = arith.constant 1 : index
    %c0_24 = arith.constant 0 : index
    %22 = vector.load %arg2[%c0_21, %c1_22, %c1_23, %c0_24] : memref<1x9x9x16xbf16, #tpu.memory_space<vmem>>, vector<1x8x8x16xbf16>
    %23 = vector.shape_cast %22 : vector<1x8x8x16xbf16> to vector<8x8x16xbf16>
    %24 = vector.shape_cast %23 : vector<8x8x16xbf16> to vector<64x16xbf16>
    %c3 = arith.constant 3 : index
    %c0_25 = arith.constant 0 : index
    %c0_26 = arith.constant 0 : index
    %25 = vector.load %arg3[%c3, %c0_25, %c0_26] : memref<4x16x128xbf16, #tpu.memory_space<vmem>>, vector<1x16x128xbf16>
    %26 = vector.shape_cast %25 : vector<1x16x128xbf16> to vector<16x128xbf16>
    %cst_27 = arith.constant dense<0.000000e+00> : vector<64x128xf32>
    %27 = tpu.matmul %24, %26, %cst_27 {dimension_numbers = #tpu.dot_dimension_numbers<[1], [0], [0], [1], [0, 0, 1, 1], [], []>} : vector<64x16xbf16>, vector<16x128xbf16>, vector<64x128xf32> -> vector<64x128xf32>
    %28 = arith.addf %21, %27 : vector<64x128xf32>
    %c0_28 = arith.constant 0 : index
    %c0_29 = arith.constant 0 : index
    %29 = vector.load %arg4[%c0_28, %c0_29] : memref<1x128xf32, #tpu.memory_space<vmem>>, vector<1x128xf32>
    %30 = vector.broadcast %29 : vector<1x128xf32> to vector<64x128xf32>
    %31 = arith.addf %28, %30 : vector<64x128xf32>
    %cst_30 = arith.constant 1.000000e-01 : f32
    %32 = vector.broadcast %cst_30 : f32 to vector<64x128xf32>
    %33 = arith.mulf %32, %31 : vector<64x128xf32>
    %34 = arith.maximumf %31, %33 : vector<64x128xf32>
    %35 = arith.truncf %34 : vector<64x128xf32> to vector<64x128xbf16>
    %c0_31 = arith.constant 0 : index
    %c0_32 = arith.constant 0 : index
    %c0_33 = arith.constant 0 : index
    %36 = vector.load %arg5[%c0_31, %c0_32, %c0_33] : memref<1x64x128xbf16, #tpu.memory_space<vmem>>, vector<1x64x128xbf16>
    %37 = vector.shape_cast %36 : vector<1x64x128xbf16> to vector<64x128xbf16>
    %38 = vector.shape_cast %35 : vector<64x128xbf16> to vector<1x64x128xbf16>
    tpu.vector_store %arg5[%c0_31, %c0_32, %c0_33], %38 {strides = array<i32>} : memref<1x64x128xbf16, #tpu.memory_space<vmem>>, vector<1x64x128xbf16>,
    return
  }
  func.func @transform_0(%arg0: i32, %arg1: i32) -> (i32, i32, i32, i32) {
    %c0_i32 = arith.constant 0 : i32
    %c0_i32_0 = arith.constant 0 : i32
    %c0_i32_1 = arith.constant 0 : i32
    %c0_i32_2 = arith.constant 0 : i32
    return %arg0, %c0_i32, %c0_i32_0, %c0_i32_1 : i32, i32, i32, i32
  }
  func.func @transform_1(%arg0: i32, %arg1: i32) -> (i32, i32, i32) {
    %c0_i32 = arith.constant 0 : i32
    %c0_i32_0 = arith.constant 0 : i32
    %c0_i32_1 = arith.constant 0 : i32
    return %c0_i32, %c0_i32_0, %arg1 : i32, i32, i32
  }
  func.func @transform_2(%arg0: i32, %arg1: i32) -> (i32, i32) {
    %c0_i32 = arith.constant 0 : i32
    %c0_i32_0 = arith.constant 0 : i32
    return %c0_i32, %arg1 : i32, i32
  }
  func.func @transform_3(%arg0: i32, %arg1: i32) -> (i32, i32, i32) {
    %c0_i32 = arith.constant 0 : i32
    %c0_i32_0 = arith.constant 0 : i32
    return %arg0, %c0_i32, %arg1 : i32, i32, i32
  }
}

module attributes {stable_mosaic.version = 11 : i64} {
  func.func @_conv_taps_lrelu_kernel(%arg0: i32, %arg1: i32, %arg2: memref<1x10x10x128xbf16, #tpu.memory_space<vmem>>, %arg3: memref<9x128x128xbf16, #tpu.memory_space<vmem>>, %arg4: memref<1x128xf32, #tpu.memory_space<vmem>>, %arg5: memref<1x64x128xf32, #tpu.memory_space<vmem>>) attributes {dimension_semantics = [#tpu.dimension_semantics<parallel>, #tpu.dimension_semantics<parallel>], iteration_bounds = array<i64: 2, 1>, scalar_prefetch = 0 : i64, scratch_operands = 0 : i64, tpu.core_type = #tpu.core_type<tc>, window_params = [{transform_indices = @transform_0, window_bounds = array<i64: 1, 10, 10, 128>}, {transform_indices = @transform_1, window_bounds = array<i64: 9, 128, 128>}, {transform_indices = @transform_2, window_bounds = array<i64: 1, 128>}, {transform_indices = @transform_3, window_bounds = array<i64: 1, 64, 128>}]} {
    %cst = arith.constant 0.000000e+00 : f32
    %0 = vector.broadcast %cst : f32 to vector<64x128xf32>
    %c0 = arith.constant 0 : index
    %c0_0 = arith.constant 0 : index
    %c0_1 = arith.constant 0 : index
    %c0_2 = arith.constant 0 : index
    %1 = vector.load %arg2[%c0, %c0_0, %c0_1, %c0_2] : memref<1x10x10x128xbf16, #tpu.memory_space<vmem>>, vector<1x8x8x128xbf16>
    %2 = vector.shape_cast %1 : vector<1x8x8x128xbf16> to vector<8x8x128xbf16>
    %3 = vector.shape_cast %2 : vector<8x8x128xbf16> to vector<64x128xbf16>
    %c0_3 = arith.constant 0 : index
    %c0_4 = arith.constant 0 : index
    %c0_5 = arith.constant 0 : index
    %4 = vector.load %arg3[%c0_3, %c0_4, %c0_5] : memref<9x128x128xbf16, #tpu.memory_space<vmem>>, vector<1x128x128xbf16>
    %5 = vector.shape_cast %4 : vector<1x128x128xbf16> to vector<128x128xbf16>
    %cst_6 = arith.constant dense<0.000000e+00> : vector<64x128xf32>
    %6 = tpu.matmul %3, %5, %cst_6 {dimension_numbers = #tpu.dot_dimension_numbers<[1], [0], [0], [1], [0, 0, 1, 1], [], []>} : vector<64x128xbf16>, vector<128x128xbf16>, vector<64x128xf32> -> vector<64x128xf32>
    %7 = arith.addf %0, %6 : vector<64x128xf32>
    %c0_7 = arith.constant 0 : index
    %c0_8 = arith.constant 0 : index
    %c1 = arith.constant 1 : index
    %c0_9 = arith.constant 0 : index
    %8 = vector.load %arg2[%c0_7, %c0_8, %c1, %c0_9] : memref<1x10x10x128xbf16, #tpu.memory_space<vmem>>, vector<1x8x8x128xbf16>
    %9 = vector.shape_cast %8 : vector<1x8x8x128xbf16> to vector<8x8x128xbf16>
    %10 = vector.shape_cast %9 : vector<8x8x128xbf16> to vector<64x128xbf16>
    %c1_10 = arith.constant 1 : index
    %c0_11 = arith.constant 0 : index
    %c0_12 = arith.constant 0 : index
    %11 = vector.load %arg3[%c1_10, %c0_11, %c0_12] : memref<9x128x128xbf16, #tpu.memory_space<vmem>>, vector<1x128x128xbf16>
    %12 = vector.shape_cast %11 : vector<1x128x128xbf16> to vector<128x128xbf16>
    %cst_13 = arith.constant dense<0.000000e+00> : vector<64x128xf32>
    %13 = tpu.matmul %10, %12, %cst_13 {dimension_numbers = #tpu.dot_dimension_numbers<[1], [0], [0], [1], [0, 0, 1, 1], [], []>} : vector<64x128xbf16>, vector<128x128xbf16>, vector<64x128xf32> -> vector<64x128xf32>
    %14 = arith.addf %7, %13 : vector<64x128xf32>
    %c0_14 = arith.constant 0 : index
    %c0_15 = arith.constant 0 : index
    %c2 = arith.constant 2 : index
    %c0_16 = arith.constant 0 : index
    %15 = vector.load %arg2[%c0_14, %c0_15, %c2, %c0_16] : memref<1x10x10x128xbf16, #tpu.memory_space<vmem>>, vector<1x8x8x128xbf16>
    %16 = vector.shape_cast %15 : vector<1x8x8x128xbf16> to vector<8x8x128xbf16>
    %17 = vector.shape_cast %16 : vector<8x8x128xbf16> to vector<64x128xbf16>
    %c2_17 = arith.constant 2 : index
    %c0_18 = arith.constant 0 : index
    %c0_19 = arith.constant 0 : index
    %18 = vector.load %arg3[%c2_17, %c0_18, %c0_19] : memref<9x128x128xbf16, #tpu.memory_space<vmem>>, vector<1x128x128xbf16>
    %19 = vector.shape_cast %18 : vector<1x128x128xbf16> to vector<128x128xbf16>
    %cst_20 = arith.constant dense<0.000000e+00> : vector<64x128xf32>
    %20 = tpu.matmul %17, %19, %cst_20 {dimension_numbers = #tpu.dot_dimension_numbers<[1], [0], [0], [1], [0, 0, 1, 1], [], []>} : vector<64x128xbf16>, vector<128x128xbf16>, vector<64x128xf32> -> vector<64x128xf32>
    %21 = arith.addf %14, %20 : vector<64x128xf32>
    %c0_21 = arith.constant 0 : index
    %c1_22 = arith.constant 1 : index
    %c0_23 = arith.constant 0 : index
    %c0_24 = arith.constant 0 : index
    %22 = vector.load %arg2[%c0_21, %c1_22, %c0_23, %c0_24] : memref<1x10x10x128xbf16, #tpu.memory_space<vmem>>, vector<1x8x8x128xbf16>
    %23 = vector.shape_cast %22 : vector<1x8x8x128xbf16> to vector<8x8x128xbf16>
    %24 = vector.shape_cast %23 : vector<8x8x128xbf16> to vector<64x128xbf16>
    %c3 = arith.constant 3 : index
    %c0_25 = arith.constant 0 : index
    %c0_26 = arith.constant 0 : index
    %25 = vector.load %arg3[%c3, %c0_25, %c0_26] : memref<9x128x128xbf16, #tpu.memory_space<vmem>>, vector<1x128x128xbf16>
    %26 = vector.shape_cast %25 : vector<1x128x128xbf16> to vector<128x128xbf16>
    %cst_27 = arith.constant dense<0.000000e+00> : vector<64x128xf32>
    %27 = tpu.matmul %24, %26, %cst_27 {dimension_numbers = #tpu.dot_dimension_numbers<[1], [0], [0], [1], [0, 0, 1, 1], [], []>} : vector<64x128xbf16>, vector<128x128xbf16>, vector<64x128xf32> -> vector<64x128xf32>
    %28 = arith.addf %21, %27 : vector<64x128xf32>
    %c0_28 = arith.constant 0 : index
    %c1_29 = arith.constant 1 : index
    %c1_30 = arith.constant 1 : index
    %c0_31 = arith.constant 0 : index
    %29 = vector.load %arg2[%c0_28, %c1_29, %c1_30, %c0_31] : memref<1x10x10x128xbf16, #tpu.memory_space<vmem>>, vector<1x8x8x128xbf16>
    %30 = vector.shape_cast %29 : vector<1x8x8x128xbf16> to vector<8x8x128xbf16>
    %31 = vector.shape_cast %30 : vector<8x8x128xbf16> to vector<64x128xbf16>
    %c4 = arith.constant 4 : index
    %c0_32 = arith.constant 0 : index
    %c0_33 = arith.constant 0 : index
    %32 = vector.load %arg3[%c4, %c0_32, %c0_33] : memref<9x128x128xbf16, #tpu.memory_space<vmem>>, vector<1x128x128xbf16>
    %33 = vector.shape_cast %32 : vector<1x128x128xbf16> to vector<128x128xbf16>
    %cst_34 = arith.constant dense<0.000000e+00> : vector<64x128xf32>
    %34 = tpu.matmul %31, %33, %cst_34 {dimension_numbers = #tpu.dot_dimension_numbers<[1], [0], [0], [1], [0, 0, 1, 1], [], []>} : vector<64x128xbf16>, vector<128x128xbf16>, vector<64x128xf32> -> vector<64x128xf32>
    %35 = arith.addf %28, %34 : vector<64x128xf32>
    %c0_35 = arith.constant 0 : index
    %c1_36 = arith.constant 1 : index
    %c2_37 = arith.constant 2 : index
    %c0_38 = arith.constant 0 : index
    %36 = vector.load %arg2[%c0_35, %c1_36, %c2_37, %c0_38] : memref<1x10x10x128xbf16, #tpu.memory_space<vmem>>, vector<1x8x8x128xbf16>
    %37 = vector.shape_cast %36 : vector<1x8x8x128xbf16> to vector<8x8x128xbf16>
    %38 = vector.shape_cast %37 : vector<8x8x128xbf16> to vector<64x128xbf16>
    %c5 = arith.constant 5 : index
    %c0_39 = arith.constant 0 : index
    %c0_40 = arith.constant 0 : index
    %39 = vector.load %arg3[%c5, %c0_39, %c0_40] : memref<9x128x128xbf16, #tpu.memory_space<vmem>>, vector<1x128x128xbf16>
    %40 = vector.shape_cast %39 : vector<1x128x128xbf16> to vector<128x128xbf16>
    %cst_41 = arith.constant dense<0.000000e+00> : vector<64x128xf32>
    %41 = tpu.matmul %38, %40, %cst_41 {dimension_numbers = #tpu.dot_dimension_numbers<[1], [0], [0], [1], [0, 0, 1, 1], [], []>} : vector<64x128xbf16>, vector<128x128xbf16>, vector<64x128xf32> -> vector<64x128xf32>
    %42 = arith.addf %35, %41 : vector<64x128xf32>
    %c0_42 = arith.constant 0 : index
    %c2_43 = arith.constant 2 : index
    %c0_44 = arith.constant 0 : index
    %c0_45 = arith.constant 0 : index
    %43 = vector.load %arg2[%c0_42, %c2_43, %c0_44, %c0_45] : memref<1x10x10x128xbf16, #tpu.memory_space<vmem>>, vector<1x8x8x128xbf16>
    %44 = vector.shape_cast %43 : vector<1x8x8x128xbf16> to vector<8x8x128xbf16>
    %45 = vector.shape_cast %44 : vector<8x8x128xbf16> to vector<64x128xbf16>
    %c6 = arith.constant 6 : index
    %c0_46 = arith.constant 0 : index
    %c0_47 = arith.constant 0 : index
    %46 = vector.load %arg3[%c6, %c0_46, %c0_47] : memref<9x128x128xbf16, #tpu.memory_space<vmem>>, vector<1x128x128xbf16>
    %47 = vector.shape_cast %46 : vector<1x128x128xbf16> to vector<128x128xbf16>
    %cst_48 = arith.constant dense<0.000000e+00> : vector<64x128xf32>
    %48 = tpu.matmul %45, %47, %cst_48 {dimension_numbers = #tpu.dot_dimension_numbers<[1], [0], [0], [1], [0, 0, 1, 1], [], []>} : vector<64x128xbf16>, vector<128x128xbf16>, vector<64x128xf32> -> vector<64x128xf32>
    %49 = arith.addf %42, %48 : vector<64x128xf32>
    %c0_49 = arith.constant 0 : index
    %c2_50 = arith.constant 2 : index
    %c1_51 = arith.constant 1 : index
    %c0_52 = arith.constant 0 : index
    %50 = vector.load %arg2[%c0_49, %c2_50, %c1_51, %c0_52] : memref<1x10x10x128xbf16, #tpu.memory_space<vmem>>, vector<1x8x8x128xbf16>
    %51 = vector.shape_cast %50 : vector<1x8x8x128xbf16> to vector<8x8x128xbf16>
    %52 = vector.shape_cast %51 : vector<8x8x128xbf16> to vector<64x128xbf16>
    %c7 = arith.constant 7 : index
    %c0_53 = arith.constant 0 : index
    %c0_54 = arith.constant 0 : index
    %53 = vector.load %arg3[%c7, %c0_53, %c0_54] : memref<9x128x128xbf16, #tpu.memory_space<vmem>>, vector<1x128x128xbf16>
    %54 = vector.shape_cast %53 : vector<1x128x128xbf16> to vector<128x128xbf16>
    %cst_55 = arith.constant dense<0.000000e+00> : vector<64x128xf32>
    %55 = tpu.matmul %52, %54, %cst_55 {dimension_numbers = #tpu.dot_dimension_numbers<[1], [0], [0], [1], [0, 0, 1, 1], [], []>} : vector<64x128xbf16>, vector<128x128xbf16>, vector<64x128xf32> -> vector<64x128xf32>
    %56 = arith.addf %49, %55 : vector<64x128xf32>
    %c0_56 = arith.constant 0 : index
    %c2_57 = arith.constant 2 : index
    %c2_58 = arith.constant 2 : index
    %c0_59 = arith.constant 0 : index
    %57 = vector.load %arg2[%c0_56, %c2_57, %c2_58, %c0_59] : memref<1x10x10x128xbf16, #tpu.memory_space<vmem>>, vector<1x8x8x128xbf16>
    %58 = vector.shape_cast %57 : vector<1x8x8x128xbf16> to vector<8x8x128xbf16>
    %59 = vector.shape_cast %58 : vector<8x8x128xbf16> to vector<64x128xbf16>
    %c8 = arith.constant 8 : index
    %c0_60 = arith.constant 0 : index
    %c0_61 = arith.constant 0 : index
    %60 = vector.load %arg3[%c8, %c0_60, %c0_61] : memref<9x128x128xbf16, #tpu.memory_space<vmem>>, vector<1x128x128xbf16>
    %61 = vector.shape_cast %60 : vector<1x128x128xbf16> to vector<128x128xbf16>
    %cst_62 = arith.constant dense<0.000000e+00> : vector<64x128xf32>
    %62 = tpu.matmul %59, %61, %cst_62 {dimension_numbers = #tpu.dot_dimension_numbers<[1], [0], [0], [1], [0, 0, 1, 1], [], []>} : vector<64x128xbf16>, vector<128x128xbf16>, vector<64x128xf32> -> vector<64x128xf32>
    %63 = arith.addf %56, %62 : vector<64x128xf32>
    %c0_63 = arith.constant 0 : index
    %c0_64 = arith.constant 0 : index
    %64 = vector.load %arg4[%c0_63, %c0_64] : memref<1x128xf32, #tpu.memory_space<vmem>>, vector<1x128xf32>
    %65 = vector.broadcast %64 : vector<1x128xf32> to vector<64x128xf32>
    %66 = arith.addf %63, %65 : vector<64x128xf32>
    %cst_65 = arith.constant 1.000000e-01 : f32
    %67 = vector.broadcast %cst_65 : f32 to vector<64x128xf32>
    %68 = arith.mulf %67, %66 : vector<64x128xf32>
    %69 = arith.maximumf %66, %68 : vector<64x128xf32>
    %c0_66 = arith.constant 0 : index
    %c0_67 = arith.constant 0 : index
    %c0_68 = arith.constant 0 : index
    %70 = vector.load %arg5[%c0_66, %c0_67, %c0_68] : memref<1x64x128xf32, #tpu.memory_space<vmem>>, vector<1x64x128xf32>
    %71 = vector.shape_cast %70 : vector<1x64x128xf32> to vector<64x128xf32>
    %72 = vector.shape_cast %69 : vector<64x128xf32> to vector<1x64x128xf32>
    tpu.vector_store %arg5[%c0_66, %c0_67, %c0_68], %72 {strides = array<i32>} : memref<1x64x128xf32, #tpu.memory_space<vmem>>, vector<1x64x128xf32>,
    return
  }
  func.func @transform_0(%arg0: i32, %arg1: i32) -> (i32, i32, i32, i32) {
    %c0_i32 = arith.constant 0 : i32
    %c0_i32_0 = arith.constant 0 : i32
    %c0_i32_1 = arith.constant 0 : i32
    %c0_i32_2 = arith.constant 0 : i32
    return %arg0, %c0_i32, %c0_i32_0, %c0_i32_1 : i32, i32, i32, i32
  }
  func.func @transform_1(%arg0: i32, %arg1: i32) -> (i32, i32, i32) {
    %c0_i32 = arith.constant 0 : i32
    %c0_i32_0 = arith.constant 0 : i32
    %c0_i32_1 = arith.constant 0 : i32
    return %c0_i32, %c0_i32_0, %arg1 : i32, i32, i32
  }
  func.func @transform_2(%arg0: i32, %arg1: i32) -> (i32, i32) {
    %c0_i32 = arith.constant 0 : i32
    %c0_i32_0 = arith.constant 0 : i32
    return %c0_i32, %arg1 : i32, i32
  }
  func.func @transform_3(%arg0: i32, %arg1: i32) -> (i32, i32, i32) {
    %c0_i32 = arith.constant 0 : i32
    %c0_i32_0 = arith.constant 0 : i32
    return %arg0, %c0_i32, %arg1 : i32, i32, i32
  }
}

</mosaic_0001>

<llo_original>
// kernel: down_block_forward.2
$region0: #{down_block_forward.2}
  #allocation0 [shape = 'u32[]', space=smem, size = 0x4, offset = 0x4, fixed_abs, tag = 'smem constant byte address 0x4 - core index']
  #allocation1 [shape = 'u32[144,128]{1,0:T(1,128)}', space=vmem, size = 0x12000, scoped, tag = 'internal scratch']
  %s0 = inlined_call_operand.vmem [shape: bf16[2,9,9,16], index: 0, kind: input, shape index: {}]
  %s1 = inlined_call_operand.vmem [shape: bf16[4,16,128], index: 1, kind: input, shape index: {}]
  %s2 = inlined_call_operand.vmem [shape: f32[1,128], index: 2, kind: input, shape index: {}]
  %s3 = inlined_call_operand.vmem [shape: bf16[2,64,128], index: 3, kind: output, shape index: {}]
  %s4 = sld [smem:[#allocation0]]
  $region45: #{down_block_forward.2} parent=0
    _
  %s6 = ssub.s32 1, %s4
  %s7 = scalar_select 0, %s6, %s4
  loop: start=0, step=1, limit=4
  $region2: #{down_block_forward.2} parent=0 // loop_pre_header
    _
  $region3: #{down_block_forward.2} parent=0 // loop_header
    %s9 = sphi 0, %s13
    %p10 = scmp.ge.s32.totalorder %s9, 4
    %s16 = sphi 0, %s28
    %s17 = sphi 0, %s24
    %s18 = sphi 0, %s16
    %s19 = sphi 0, %s17
    %s20 = sphi 0, %s18
    %s21 = sphi 0, %s19
    %s31 = sphi 0, %s33
    %s34 = sphi 0, %s31
    %s35 = sphi 0, %s34
    %s51 = sphi 0, %s35
    %s57 = sphi 0, %s59
    %s60 = sphi 0, %s57
    %s61 = sphi 0, %s60
    %s77 = sphi 0, %s61
    %s83 = sphi 0, %s85
    %s86 = sphi 0, %s83
    %s87 = sphi 0, %s86
    %s103 = sphi 0, %s87
    %s111 = sphi 0, %s113
    %s114 = sphi 0, %s111
    %s115 = sphi 0, %s114
    %s131 = sphi 0, %s115
  $region4: #{down_block_forward.2} parent=0 // loop_header_branch
    %12 = sbr.rel (%p10) target = $region8
  $region5: #{down_block_forward.2} parent=0 // loop_body
    %s14 = ssub.s32 %s9, 1
    %s15 = ssub.s32 %s9, 2
    %s22 = sadd.s32 1, %s17
    %p23 = scmp.ge.s32.totalorder %s22, 1
    %s24 = scalar_select %p23, 0, %s22
    %s25 = sadd.s32 1, %s16
    %s26 = scalar_select %p23, %s25, %s16
    %p27 = scmp.ge.s32.totalorder %s26, 2
    %s28 = scalar_select %p27, 0, %s26
    %s29 = ssub.s32 %s16, %s28
    %p30 = scmp.eq.s32.totalorder %s29, 0
    %s32 = sadd.s32 %s31, 1
    %s33 = scalar_select %p30, %s31, %s32
    %p36 = pneg %p30
    %p37 = scmp.eq.s32.totalorder %s9, 1
    %p38 = por %p36, %p37
    %p39 = scmp.ne.s32.totalorder %s31, %s34
    %p40 = scmp.eq.s32.totalorder %s9, 0
    %p41 = por %p39, %p40
    %p42 = scmp.ne.s32.totalorder %s31, %s34
    %p43 = scmp.eq.s32.totalorder %s14, 1
    %p44 = por %p42, %p43
    %p45 = scmp.ne.s32.totalorder %s34, %s35
    %p46 = scmp.eq.s32.totalorder %s14, 0
    %p47 = por %p45, %p46
    %p48 = scmp.ne.s32.totalorder %s34, %s35
    %p49 = scmp.eq.s32.totalorder %s15, 1
    %p50 = por %p48, %p49
    %p52 = scmp.ne.s32.totalorder %s35, %s51
    %p53 = scmp.eq.s32.totalorder %s15, 0
    %p54 = por %p52, %p53
    %s55 = ssub.s32 %s17, %s24
    %p56 = scmp.eq.s32.totalorder %s55, 0
    %s58 = sadd.s32 %s57, 1
    %s59 = scalar_select %p56, %s57, %s58
    %p62 = pneg %p56
    %p63 = scmp.eq.s32.totalorder %s9, 1
    %p64 = por %p62, %p63
    %p65 = scmp.ne.s32.totalorder %s57, %s60
    %p66 = scmp.eq.s32.totalorder %s9, 0
    %p67 = por %p65, %p66
    %p68 = scmp.ne.s32.totalorder %s57, %s60
    %p69 = scmp.eq.s32.totalorder %s14, 1
    %p70 = por %p68, %p69
    %p71 = scmp.ne.s32.totalorder %s60, %s61
    %p72 = scmp.eq.s32.totalorder %s14, 0
    %p73 = por %p71, %p72
    %p74 = scmp.ne.s32.totalorder %s60, %s61
    %p75 = scmp.eq.s32.totalorder %s15, 1
    %p76 = por %p74, %p75
    %p78 = scmp.ne.s32.totalorder %s61, %s77
    %p79 = scmp.eq.s32.totalorder %s15, 0
    %p80 = por %p78, %p79
    %s81 = ssub.s32 %s17, %s24
    %p82 = scmp.eq.s32.totalorder %s81, 0
    %s84 = sadd.s32 %s83, 1
    %s85 = scalar_select %p82, %s83, %s84
    %p88 = pneg %p82
    %p89 = scmp.eq.s32.totalorder %s9, 1
    %p90 = por %p88, %p89
    %p91 = scmp.ne.s32.totalorder %s83, %s86
    %p92 = scmp.eq.s32.totalorder %s9, 0
    %p93 = por %p91, %p92
    %p94 = scmp.ne.s32.totalorder %s83, %s86
    %p95 = scmp.eq.s32.totalorder %s14, 1
    %p96 = por %p94, %p95
    %p97 = scmp.ne.s32.totalorder %s86, %s87
    %p98 = scmp.eq.s32.totalorder %s14, 0
    %p99 = por %p97, %p98
    %p100 = scmp.ne.s32.totalorder %s86, %s87
    %p101 = scmp.eq.s32.totalorder %s15, 1
    %p102 = por %p100, %p101
    %p104 = scmp.ne.s32.totalorder %s87, %s103
    %p105 = scmp.eq.s32.totalorder %s15, 0
    %p106 = por %p104, %p105
    %s107 = ssub.s32 %s16, %s28
    %s108 = ssub.s32 %s17, %s24
    %s109 = sor.u32 %s107, %s108
    %p110 = scmp.eq.s32.totalorder %s109, 0
    %s112 = sadd.s32 %s111, 1
    %s113 = scalar_select %p110, %s111, %s112
    %p116 = pneg %p110
    %p117 = scmp.eq.s32.totalorder %s9, 1
    %p118 = por %p116, %p117
    %p119 = scmp.ne.s32.totalorder %s111, %s114
    %p120 = scmp.eq.s32.totalorder %s9, 0
    %p121 = por %p119, %p120
    %p122 = scmp.ne.s32.totalorder %s111, %s114
    %p123 = scmp.eq.s32.totalorder %s14, 1
    %p124 = por %p122, %p123
    %p125 = scmp.ne.s32.totalorder %s114, %s115
    %p126 = scmp.eq.s32.totalorder %s14, 0
    %p127 = por %p125, %p126
    %p128 = scmp.ne.s32.totalorder %s114, %s115
    %p129 = scmp.eq.s32.totalorder %s15, 1
    %p130 = por %p128, %p129
    %p132 = scmp.ne.s32.totalorder %s115, %s131
    %p133 = scmp.eq.s32.totalorder %s15, 0
    %p134 = por %p132, %p133
    %p135 = scmp.le.s32.totalorder 1, %s9
    %p136 = scmp.lt.s32.totalorder %s9, 3
    %p137 = pnand %p135, %p136
    %p138 = pneg %p137
    // Predicated region
    $region9: #{down_block_forward.2} parent=5 // pred_check
      _
    $region10: #{down_block_forward.2} parent=5 // pred_check_branch
      %140 = sbr.rel (%p137) target = $region12
    $region11: #{down_block_forward.2} parent=5 // pred_region
      %s141 = ssub.s32 %s9, 1
      // Predicated region
      $region13: #{down_block_forward.2} parent=11 // pred_check
        %p142 = pneg %p73
      $region14: #{down_block_forward.2} parent=11 // pred_check_branch
        %144 = sbr.rel (%p142) target = $region16
      $region15: #{down_block_forward.2} parent=11 // pred_region
        %p145 = scmp.lt.s32.totalorder %s19, 0
        %s146 = scalar_select %p145, %s19, 0
        %s147 = smul.addr %s146, 4
        %s148 = scalar_lea.vmem %s1, %s147
      $region16: #{down_block_forward.2} parent=11 // pred_fallthru
        _
      // Predicated region
      $region17: #{down_block_forward.2} parent=11 // pred_check
        %p149 = pneg %p99
      $region18: #{down_block_forward.2} parent=11 // pred_check_branch
        %151 = sbr.rel (%p149) target = $region20
      $region19: #{down_block_forward.2} parent=11 // pred_region
        %p152 = scmp.lt.s32.totalorder %s19, 0
        %s153 = scalar_select %p152, %s19, 0
        %s154 = scalar_lea.vmem %s2, %s153
      $region20: #{down_block_forward.2} parent=11 // pred_fallthru
        _
    $region12: #{down_block_forward.2} parent=5 // pred_fallthru
      _
    %p155 = scmp.lt.s32.totalorder %s9, 2
    // Predicated region
    $region21: #{down_block_forward.2} parent=5 // pred_check
      %p156 = pneg %p155
    $region22: #{down_block_forward.2} parent=5 // pred_check_branch
      %158 = sbr.rel (%p156) target = $region24
    $region23: #{down_block_forward.2} parent=5 // pred_region
      // Predicated region
      $region25: #{down_block_forward.2} parent=23 // pred_check
        %p159 = pneg %p41
      $region26: #{down_block_forward.2} parent=23 // pred_check_branch
        %161 = sbr.rel (%p159) target = $region28
      $region27: #{down_block_forward.2} parent=23 // pred_region
        %p162 = scmp.lt.s32.totalorder %s16, 1
        %s163 = scalar_select %p162, %s16, 1
        %s164 = smul.addr %s163, 18
        %s165 = smul.addr %s164, 4
        %s166 = scalar_lea.vmem %s0, %s165
      $region28: #{down_block_forward.2} parent=23 // pred_fallthru
        _
    $region24: #{down_block_forward.2} parent=5 // pred_fallthru
      _
    %p167 = scmp.le.s32.totalorder 1, %s9
    %p168 = scmp.lt.s32.totalorder %s9, 3
    %p169 = pnand %p167, %p168
    %p170 = pneg %p169
    // Predicated region
    $region29: #{down_block_forward.2} parent=5 // pred_check
      _
    $region30: #{down_block_forward.2} parent=5 // pred_check_branch
      %172 = sbr.rel (%p169) target = $region32
    $region31: #{down_block_forward.2} parent=5 // pred_region
      %s173 = ssub.s32 %s9, 1
      %p174 = scmp.lt.s32.totalorder %s18, 1
      %s175 = scalar_select %p174, %s18, 1
      %s176 = smul.addr %s175, 18
      %s177 = smul.addr %s176, 4
      %s178 = scalar_lea.vmem %s0, %s177
      %p179 = pneg %p47
      %p180 = pneg %p44
      %p181 = scmp.lt.s32.totalorder %s19, 0
      %s182 = scalar_select %p181, %s19, 0
      %s183 = smul.addr %s182, 4
      %s184 = scalar_lea.vmem %s1, %s183
      %p185 = pneg %p73
      %p186 = pneg %p70
      %p187 = scmp.lt.s32.totalorder %s19, 0
      %s188 = scalar_select %p187, %s19, 0
      %s189 = scalar_lea.vmem %s2, %s188
      %p190 = pneg %p99
      %p191 = pneg %p96
      %p192 = pneg %p127
      %p193 = pneg %p124
      %p194 = scmp.lt.s32.totalorder %s18, 1
      %s195 = scalar_select %p194, %s18, 1
      %p196 = scmp.lt.s32.totalorder %s19, 0
      %s197 = scalar_select %p196, %s19, 0
      %s198 = smul.addr %s195, 8
      %s199 = sadd.s32 %s197, %s198
      %s200 = smul.addr %s199, 4
      %s201 = scalar_lea.vmem %s3, %s200
      %p202 = scmp.lt.s32.totalorder %s18, 1
      %s203 = scalar_select %p202, %s18, 1
      %s204 = smul.addr %s203, 18
      %s205 = smul.addr %s204, 4
      %s206 = scalar_lea.vmem %s0, %s205
      %p207 = scmp.lt.s32.totalorder %s19, 0
      %s208 = scalar_select %p207, %s19, 0
      %s209 = smul.addr %s208, 4
      %s210 = scalar_lea.vmem %s1, %s209
      %p211 = scmp.lt.s32.totalorder %s19, 0
      %s212 = scalar_select %p211, %s19, 0
      %s213 = scalar_lea.vmem %s2, %s212
      %p214 = scmp.lt.s32.totalorder %s18, 1
      %s215 = scalar_select %p214, %s18, 1
      %p216 = scmp.lt.s32.totalorder %s19, 0
      %s217 = scalar_select %p216, %s19, 0
      %s218 = smul.addr %s215, 8
      %s219 = sadd.s32 %s217, %s218
      %s220 = smul.addr %s219, 4
      %s221 = scalar_lea.vmem %s3, %s220
      %v223 = vld [vmem:[%s206] sm:$0xf]
      %v224 = vld [vmem:[%s206 + $0x8] sm:$0xf]
      %v225 = vld [vmem:[%s206 + $0x10] sm:$0xf]
      %v226 = vld [vmem:[%s206 + $0x18] sm:$0xf]
      %v227 = vld [vmem:[%s206 + $0x20] sm:$0xf]
      %v228 = vld [vmem:[%s206 + $0x28] sm:$0xf]
      %v229 = vld [vmem:[%s206 + $0x30] sm:$0xf]
      %v230 = vld [vmem:[%s206 + $0x38] sm:$0xf]
      %v231 = vld [vmem:[%s210] sm:$0xf]
      %v232 = vld [vmem:[%s210 + $0x4] sm:$0xf]
      %v233 = vld [vmem:[%s206 + $0x4] sm:$0x1]
      %v234 = vld [vmem:[%s206 + $0xc] sm:$0x1]
      %v235 = vld [vmem:[%s206 + $0x14] sm:$0x1]
      %v236 = vld [vmem:[%s206 + $0x1c] sm:$0x1]
      %v237 = vld [vmem:[%s206 + $0x24] sm:$0x1]
      %v238 = vld [vmem:[%s206 + $0x2c] sm:$0x1]
      %v239 = vld [vmem:[%s206 + $0x34] sm:$0x1]
      %v240 = vld [vmem:[%s206 + $0x3c] sm:$0x1]
      %vm241 = vsmask.f32 3328
      %vm242 = vsmask.f32 7440
      %vm243 = vmor %vm241, %vm242
      %v245 = vshrl.u32 %v223, 16
      %v247 = vrot.slane %v245, 4
      %v248 = vshll.u32 %v223, 16
      %v250 = vrot.slane %v248, 5
      %v251 = vor.u32 %v247, %v250
      %v252 = vrot.slane %v251, 4
      %v254 = vshll.u32 %v233, 16
      %v256 = vrot.slane %v254, 5
      %v257 = vsel %vm243, %v252, %v256
      %v259 = vshrl.u32 %v224, 16
      %v261 = vrot.slane %v259, 4
      %v262 = vshll.u32 %v224, 16
      %v264 = vrot.slane %v262, 5
      %v265 = vor.u32 %v261, %v264
      %v266 = vrot.slane %v265, 4
      %v268 = vshll.u32 %v234, 16
      %v270 = vrot.slane %v268, 5
      %v271 = vsel %vm243, %v266, %v270
      %v273 = vshrl.u32 %v225, 16
      %v275 = vrot.slane %v273, 4
      %v276 = vshll.u32 %v225, 16
      %v278 = vrot.slane %v276, 5
      %v279 = vor.u32 %v275, %v278
      %v280 = vrot.slane %v279, 4
      %v282 = vshll.u32 %v235, 16
      %v284 = vrot.slane %v282, 5
      %v285 = vsel %vm243, %v280, %v284
      %v287 = vshrl.u32 %v226, 16
      %v289 = vrot.slane %v287, 4
      %v290 = vshll.u32 %v226, 16
      %v292 = vrot.slane %v290, 5
      %v293 = vor.u32 %v289, %v292
      %v294 = vrot.slane %v293, 4
      %v296 = vshll.u32 %v236, 16
      %v298 = vrot.slane %v296, 5
      %v299 = vsel %vm243, %v294, %v298
      %v301 = vshrl.u32 %v227, 16
      %v303 = vrot.slane %v301, 4
      %v304 = vshll.u32 %v227, 16
      %v306 = vrot.slane %v304, 5
      %v307 = vor.u32 %v303, %v306
      %v308 = vrot.slane %v307, 4
      %v310 = vshll.u32 %v237, 16
      %v312 = vrot.slane %v310, 5
      %v313 = vsel %vm243, %v308, %v312
      %v315 = vshrl.u32 %v228, 16
      %v317 = vrot.slane %v315, 4
      %v318 = vshll.u32 %v228, 16
      %v320 = vrot.slane %v318, 5
      %v321 = vor.u32 %v317, %v320
      %v322 = vrot.slane %v321, 4
      %v324 = vshll.u32 %v238, 16
      %v326 = vrot.slane %v324, 5
      %v327 = vsel %vm243, %v322, %v326
      %v329 = vshrl.u32 %v229, 16
      %v331 = vrot.slane %v329, 4
      %v332 = vshll.u32 %v229, 16
      %v334 = vrot.slane %v332, 5
      %v335 = vor.u32 %v331, %v334
      %v336 = vrot.slane %v335, 4
      %v338 = vshll.u32 %v239, 16
      %v340 = vrot.slane %v338, 5
      %v341 = vsel %vm243, %v336, %v340
      %v343 = vshrl.u32 %v230, 16
      %v345 = vrot.slane %v343, 4
      %v346 = vshll.u32 %v230, 16
      %v348 = vrot.slane %v346, 5
      %v349 = vor.u32 %v345, %v348
      %v350 = vrot.slane %v349, 4
      %v352 = vshll.u32 %v240, 16
      %v354 = vrot.slane %v352, 5
      %v355 = vsel %vm243, %v350, %v354
      %s356 = scalar_lea.vmem %s210, 8
      %v357 = vld [vmem:[%s356] sm:$0xf]
      %v358 = vld [vmem:[%s356 + $0x4] sm:$0xf]
      %v359 = vunpack.c.l.b16 %v257
      %v360 = vunpack.c.l.b16 %v271
      %v361 = vunpack.c.l.b16 %v285
      %v362 = vunpack.c.l.b16 %v299
      %v363 = vunpack.c.l.b16 %v313
      %v364 = vunpack.c.l.b16 %v327
      %v365 = vunpack.c.l.b16 %v341
      %v366 = vunpack.c.l.b16 %v355
      %v367 = vpack.c.b16 %v360, %v359
      %v368 = vpack.c.b16 %v362, %v361
      %v369 = vpack.c.b16 %v364, %v363
      %v370 = vpack.c.b16 %v366, %v365
      %v373 = vunpack.c.l.b16 %v357
      %v374 = vunpack.c.l.b16 %v358
      %v375 = vpack.c.b16 %v374, %v373
      %vm377 = vcmask 130048
      %v379 = vsel %vm377, %v367, 0
      %v382 = vsel %vm377, %v368, 0
      %v385 = vsel %vm377, %v369, 0
      %v388 = vsel %vm377, %v370, 0
      %390 = vmatprep.subr.bf16.mxu0 0
      %391 = vmatpush1.bf16.msra.mxu0 0
      %392 = vmatprep.subr.bf16.mxu0 0
      %393 = vmatpush1.bf16.msra.mxu0 0
      %394 = vmatprep.subr.bf16.mxu0 0
      %395 = vmatpush1.bf16.msra.mxu0 0
      %396 = vmatprep.subr.bf16.mxu0 0
      %397 = vmatpush1.bf16.msra.mxu0 0
      %398 = vmatprep.subr.bf16.mxu0 0
      %399 = vmatpush1.bf16.msra.mxu0 0
      %400 = vmatprep.subr.bf16.mxu0 0
      %401 = vmatpush1.bf16.msra.mxu0 0
      %402 = vmatprep.subr.bf16.mxu0 0
      %403 = vmatpush1.bf16.msra.mxu0 0
      %404 = vmatprep.subr.bf16.mxu0 0
      %405 = vmatpush1.bf16.msra.mxu0 %v375
      %406 = vmatprep.subr.bf16.mxu0 0
      %407 = vmatpush2.bf16.msra.mxu0 0
      %408 = vmatprep.subr.bf16.mxu0 0
      %409 = vmatpush2.bf16.msra.mxu0 0
      %410 = vmatprep.subr.bf16.mxu0 0
      %411 = vmatpush2.bf16.msra.mxu0 0
      %412 = vmatprep.subr.bf16.mxu0 0
      %413 = vmatpush2.bf16.msra.mxu0 0
      %414 = vmatprep.subr.bf16.mxu0 0
      %415 = vmatpush2.bf16.msra.mxu0 0
      %416 = vmatprep.subr.bf16.mxu0 0
      %417 = vmatpush2.bf16.msra.mxu0 0
      %418 = vmatprep.subr.bf16.mxu0 0
      %419 = vmatpush2.bf16.msra.mxu0 0
      %420 = vmatprep.subr.bf16.mxu0 0
      %421 = vmatpush2.bf16.msra.mxu0 0
      %422 = vmatprep.mubr.bf16.mxu0 0
      %423 = vmatmul.mubr.bf16.gmra.mxu0 %v379
      %v424 = vpop.f32.mrf.mxu0
      %v425 = vadd.f32 0.0, %v424
      %v426 = vpop.f32.mrf.mxu0
      %v427 = vpop.f32.mrf.mxu0
      %v428 = vadd.f32 0.0, %v427
      %v429 = vpop.f32.mrf.mxu0
      %430 = vmatprep.mubr.bf16.mxu0 0
      %431 = vmatmul.mubr.bf16.gmra.mxu0 %v382
      %v432 = vpop.f32.mrf.mxu0
      %v433 = vadd.f32 0.0, %v432
      %v434 = vpop.f32.mrf.mxu0
      %v435 = vpop.f32.mrf.mxu0
      %v436 = vadd.f32 0.0, %v435
      %v437 = vpop.f32.mrf.mxu0
      %438 = vmatprep.mubr.bf16.mxu0 0
      %439 = vmatmul.mubr.bf16.gmra.mxu0 %v385
      %v440 = vpop.f32.mrf.mxu0
      %v441 = vadd.f32 0.0, %v440
      %v442 = vpop.f32.mrf.mxu0
      %v443 = vpop.f32.mrf.mxu0
      %v444 = vadd.f32 0.0, %v443
      %v445 = vpop.f32.mrf.mxu0
      %446 = vmatprep.mubr.bf16.mxu0 0
      %447 = vmatmul.mubr.bf16.gmra.mxu0 %v388
      %v448 = vpop.f32.mrf.mxu0
      %v449 = vadd.f32 0.0, %v448
      %v450 = vpop.f32.mrf.mxu0
      %v451 = vpop.f32.mrf.mxu0
      %v452 = vadd.f32 0.0, %v451
      %v453 = vpop.f32.mrf.mxu0
      %454 = vdwg.mxu0
      %v463 = vunpack.c.l.b16 %v223
      %v464 = vunpack.c.l.b16 %v224
      %v465 = vunpack.c.l.b16 %v225
      %v466 = vunpack.c.l.b16 %v226
      %v467 = vunpack.c.l.b16 %v227
      %v468 = vunpack.c.l.b16 %v228
      %v469 = vunpack.c.l.b16 %v229
      %v470 = vunpack.c.l.b16 %v230
      %v471 = vpack.c.b16 %v464, %v463
      %v472 = vpack.c.b16 %v466, %v465
      %v473 = vpack.c.b16 %v468, %v467
      %v474 = vpack.c.b16 %v470, %v469
      %v477 = vunpack.c.l.b16 %v231
      %v478 = vunpack.c.l.b16 %v232
      %v479 = vpack.c.b16 %v478, %v477
      %v482 = vsel %vm377, %v471, 0
      %v485 = vsel %vm377, %v472, 0
      %v488 = vsel %vm377, %v473, 0
      %v491 = vsel %vm377, %v474, 0
      %493 = vmatprep.subr.bf16.mxu0 0
      %494 = vmatpush1.bf16.msra.mxu0 0
      %495 = vmatprep.subr.bf16.mxu0 0
      %496 = vmatpush1.bf16.msra.mxu0 0
      %497 = vmatprep.subr.bf16.mxu0 0
      %498 = vmatpush1.bf16.msra.mxu0 0
      %499 = vmatprep.subr.bf16.mxu0 0
      %500 = vmatpush1.bf16.msra.mxu0 0
      %501 = vmatprep.subr.bf16.mxu0 0
      %502 = vmatpush1.bf16.msra.mxu0 0
      %503 = vmatprep.subr.bf16.mxu0 0
      %504 = vmatpush1.bf16.msra.mxu0 0
      %505 = vmatprep.subr.bf16.mxu0 0
      %506 = vmatpush1.bf16.msra.mxu0 0
      %507 = vmatprep.subr.bf16.mxu0 0
      %508 = vmatpush1.bf16.msra.mxu0 %v479
      %509 = vmatprep.subr.bf16.mxu0 0
      %510 = vmatpush2.bf16.msra.mxu0 0
      %511 = vmatprep.subr.bf16.mxu0 0
      %512 = vmatpush2.bf16.msra.mxu0 0
      %513 = vmatprep.subr.bf16.mxu0 0
      %514 = vmatpush2.bf16.msra.mxu0 0
      %515 = vmatprep.subr.bf16.mxu0 0
      %516 = vmatpush2.bf16.msra.mxu0 0
      %517 = vmatprep.subr.bf16.mxu0 0
      %518 = vmatpush2.bf16.msra.mxu0 0
      %519 = vmatprep.subr.bf16.mxu0 0
      %520 = vmatpush2.bf16.msra.mxu0 0
      %521 = vmatprep.subr.bf16.mxu0 0
      %522 = vmatpush2.bf16.msra.mxu0 0
      %523 = vmatprep.subr.bf16.mxu0 0
      %524 = vmatpush2.bf16.msra.mxu0 0
      %525 = vmatprep.mubr.bf16.mxu0 0
      %526 = vmatmul.mubr.bf16.gmra.mxu0 %v482
      %v527 = vpop.f32.mrf.mxu0
      %v528 = vadd.f32 %v425, %v527
      %v529 = vpop.f32.mrf.mxu0
      %v530 = vpop.f32.mrf.mxu0
      %v531 = vadd.f32 %v428, %v530
      %v532 = vpop.f32.mrf.mxu0
      %533 = vmatprep.mubr.bf16.mxu0 0
      %534 = vmatmul.mubr.bf16.gmra.mxu0 %v485
      %v535 = vpop.f32.mrf.mxu0
      %v536 = vadd.f32 %v433, %v535
      %v537 = vpop.f32.mrf.mxu0
      %v538 = vpop.f32.mrf.mxu0
      %v539 = vadd.f32 %v436, %v538
      %v540 = vpop.f32.mrf.mxu0
      %541 = vmatprep.mubr.bf16.mxu0 0
      %542 = vmatmul.mubr.bf16.gmra.mxu0 %v488
      %v543 = vpop.f32.mrf.mxu0
      %v544 = vadd.f32 %v441, %v543
      %v545 = vpop.f32.mrf.mxu0
      %v546 = vpop.f32.mrf.mxu0
      %v547 = vadd.f32 %v444, %v546
      %v548 = vpop.f32.mrf.mxu0
      %549 = vmatprep.mubr.bf16.mxu0 0
      %550 = vmatmul.mubr.bf16.gmra.mxu0 %v491
      %v551 = vpop.f32.mrf.mxu0
      %v552 = vadd.f32 %v449, %v551
      %v553 = vpop.f32.mrf.mxu0
      %v554 = vpop.f32.mrf.mxu0
      %v555 = vadd.f32 %v452, %v554
      %v556 = vpop.f32.mrf.mxu0
      %557 = vdwg.mxu0
      %s558 = scalar_lea.vmem %s206, 8
      %v559 = vld [vmem:[%s558] sm:$0xf]
      %v560 = vld [vmem:[%s558 + $0x8] sm:$0xf]
      %v561 = vld [vmem:[%s558 + $0x10] sm:$0xf]
      %v562 = vld [vmem:[%s558 + $0x18] sm:$0xf]
      %v563 = vld [vmem:[%s558 + $0x20] sm:$0xf]
      %v564 = vld [vmem:[%s558 + $0x28] sm:$0xf]
      %v565 = vld [vmem:[%s558 + $0x30] sm:$0xf]
      %v566 = vld [vmem:[%s558 + $0x38] sm:$0xf]
      %s567 = scalar_lea.vmem %s210, 16
      %v568 = vld [vmem:[%s567] sm:$0xf]
      %v569 = vld [vmem:[%s567 + $0x4] sm:$0xf]
      %v578 = vunpack.c.l.b16 %v559
      %v579 = vunpack.c.l.b16 %v560
      %v580 = vunpack.c.l.b16 %v561
      %v581 = vunpack.c.l.b16 %v562
      %v582 = vunpack.c.l.b16 %v563
      %v583 = vunpack.c.l.b16 %v564
      %v584 = vunpack.c.l.b16 %v565
      %v585 = vunpack.c.l.b16 %v566
      %v586 = vpack.c.b16 %v579, %v578
      %v587 = vpack.c.b16 %v581, %v580
      %v588 = vpack.c.b16 %v583, %v582
      %v589 = vpack.c.b16 %v585, %v584
      %v592 = vunpack.c.l.b16 %v568
      %v593 = vunpack.c.l.b16 %v569
      %v594 = vpack.c.b16 %v593, %v592
      %v597 = vsel %vm377, %v586, 0
      %v600 = vsel %vm377, %v587, 0
      %v603 = vsel %vm377, %v588, 0
      %v606 = vsel %vm377, %v589, 0
      %608 = vmatprep.subr.bf16.mxu0 0
      %609 = vmatpush1.bf16.msra.mxu0 0
      %610 = vmatprep.subr.bf16.mxu0 0
      %611 = vmatpush1.bf16.msra.mxu0 0
      %612 = vmatprep.subr.bf16.mxu0 0
      %613 = vmatpush1.bf16.msra.mxu0 0
      %614 = vmatprep.subr.bf16.mxu0 0
      %615 = vmatpush1.bf16.msra.mxu0 0
      %616 = vmatprep.subr.bf16.mxu0 0
      %617 = vmatpush1.bf16.msra.mxu0 0
      %618 = vmatprep.subr.bf16.mxu0 0
      %619 = vmatpush1.bf16.msra.mxu0 0
      %620 = vmatprep.subr.bf16.mxu0 0
      %621 = vmatpush1.bf16.msra.mxu0 0
      %622 = vmatprep.subr.bf16.mxu0 0
      %623 = vmatpush1.bf16.msra.mxu0 %v594
      %624 = vmatprep.subr.bf16.mxu0 0
      %625 = vmatpush2.bf16.msra.mxu0 0
      %626 = vmatprep.subr.bf16.mxu0 0
      %627 = vmatpush2.bf16.msra.mxu0 0
      %628 = vmatprep.subr.bf16.mxu0 0
      %629 = vmatpush2.bf16.msra.mxu0 0
      %630 = vmatprep.subr.bf16.mxu0 0
      %631 = vmatpush2.bf16.msra.mxu0 0
      %632 = vmatprep.subr.bf16.mxu0 0
      %633 = vmatpush2.bf16.msra.mxu0 0
      %634 = vmatprep.subr.bf16.mxu0 0
      %635 = vmatpush2.bf16.msra.mxu0 0
      %636 = vmatprep.subr.bf16.mxu0 0
      %637 = vmatpush2.bf16.msra.mxu0 0
      %638 = vmatprep.subr.bf16.mxu0 0
      %639 = vmatpush2.bf16.msra.mxu0 0
      %640 = vmatprep.mubr.bf16.mxu0 0
      %641 = vmatmul.mubr.bf16.gmra.mxu0 %v597
      %v642 = vpop.f32.mrf.mxu0
      %v643 = vadd.f32 0.0, %v642
      %v644 = vpop.f32.mrf.mxu0
      %v645 = vpop.f32.mrf.mxu0
      %v646 = vadd.f32 0.0, %v645
      %v647 = vpop.f32.mrf.mxu0
      %648 = vmatprep.mubr.bf16.mxu0 0
      %649 = vmatmul.mubr.bf16.gmra.mxu0 %v600
      %v650 = vpop.f32.mrf.mxu0
      %v651 = vadd.f32 0.0, %v650
      %v652 = vpop.f32.mrf.mxu0
      %v653 = vpop.f32.mrf.mxu0
      %v654 = vadd.f32 0.0, %v653
      %v655 = vpop.f32.mrf.mxu0
      %656 = vmatprep.mubr.bf16.mxu0 0
      %657 = vmatmul.mubr.bf16.gmra.mxu0 %v603
      %v658 = vpop.f32.mrf.mxu0
      %v659 = vadd.f32 0.0, %v658
      %v660 = vpop.f32.mrf.mxu0
      %v661 = vpop.f32.mrf.mxu0
      %v662 = vadd.f32 0.0, %v661
      %v663 = vpop.f32.mrf.mxu0
      %664 = vmatprep.mubr.bf16.mxu0 0
      %665 = vmatmul.mubr.bf16.gmra.mxu0 %v606
      %v666 = vpop.f32.mrf.mxu0
      %v667 = vadd.f32 0.0, %v666
      %v668 = vpop.f32.mrf.mxu0
      %v669 = vpop.f32.mrf.mxu0
      %v670 = vadd.f32 0.0, %v669
      %v671 = vpop.f32.mrf.mxu0
      %672 = vdwg.mxu0
      %v673 = vadd.f32 %v528, %v643
      %v674 = vadd.f32 %v531, %v646
      %v675 = vadd.f32 %v536, %v651
      %v676 = vadd.f32 %v539, %v654
      %v677 = vadd.f32 %v544, %v659
      %v678 = vadd.f32 %v547, %v662
      %v679 = vadd.f32 %v552, %v667
      %v680 = vadd.f32 %v555, %v670
      %v681 = vld [vmem:[%s558] sm:$0xf]
      %v682 = vld [vmem:[%s558 + $0x4] sm:$0x1]
      %v683 = vld [vmem:[%s558 + $0x8] sm:$0xf]
      %v684 = vld [vmem:[%s558 + $0xc] sm:$0x1]
      %v685 = vld [vmem:[%s558 + $0x10] sm:$0xf]
      %v686 = vld [vmem:[%s558 + $0x14] sm:$0x1]
      %v687 = vld [vmem:[%s558 + $0x18] sm:$0xf]
      %v688 = vld [vmem:[%s558 + $0x1c] sm:$0x1]
      %v689 = vld [vmem:[%s558 + $0x20] sm:$0xf]
      %v690 = vld [vmem:[%s558 + $0x24] sm:$0x1]
      %v691 = vld [vmem:[%s558 + $0x28] sm:$0xf]
      %v692 = vld [vmem:[%s558 + $0x2c] sm:$0x1]
      %v693 = vld [vmem:[%s558 + $0x30] sm:$0xf]
      %v694 = vld [vmem:[%s558 + $0x34] sm:$0x1]
      %v695 = vld [vmem:[%s558 + $0x38] sm:$0xf]
      %v696 = vld [vmem:[%s558 + $0x3c] sm:$0x1]
      %v698 = vshrl.u32 %v681, 16
      %v700 = vrot.slane %v698, 4
      %v701 = vshll.u32 %v681, 16
      %v703 = vrot.slane %v701, 5
      %v704 = vor.u32 %v700, %v703
      %v705 = vrot.slane %v704, 4
      %v707 = vshll.u32 %v682, 16
      %v709 = vrot.slane %v707, 5
      %v710 = vsel %vm243, %v705, %v709
      %v712 = vshrl.u32 %v683, 16
      %v714 = vrot.slane %v712, 4
      %v715 = vshll.u32 %v683, 16
      %v717 = vrot.slane %v715, 5
      %v718 = vor.u32 %v714, %v717
      %v719 = vrot.slane %v718, 4
      %v721 = vshll.u32 %v684, 16
      %v723 = vrot.slane %v721, 5
      %v724 = vsel %vm243, %v719, %v723
      %v726 = vshrl.u32 %v685, 16
      %v728 = vrot.slane %v726, 4
      %v729 = vshll.u32 %v685, 16
      %v731 = vrot.slane %v729, 5
      %v732 = vor.u32 %v728, %v731
      %v733 = vrot.slane %v732, 4
      %v735 = vshll.u32 %v686, 16
      %v737 = vrot.slane %v735, 5
      %v738 = vsel %vm243, %v733, %v737
      %v740 = vshrl.u32 %v687, 16
      %v742 = vrot.slane %v740, 4
      %v743 = vshll.u32 %v687, 16
      %v745 = vrot.slane %v743, 5
      %v746 = vor.u32 %v742, %v745
      %v747 = vrot.slane %v746, 4
      %v749 = vshll.u32 %v688, 16
      %v751 = vrot.slane %v749, 5
      %v752 = vsel %vm243, %v747, %v751
      %v754 = vshrl.u32 %v689, 16
      %v756 = vrot.slane %v754, 4
      %v757 = vshll.u32 %v689, 16
      %v759 = vrot.slane %v757, 5
      %v760 = vor.u32 %v756, %v759
      %v761 = vrot.slane %v760, 4
      %v763 = vshll.u32 %v690, 16
      %v765 = vrot.slane %v763, 5
      %v766 = vsel %vm243, %v761, %v765
      %v768 = vshrl.u32 %v691, 16
      %v770 = vrot.slane %v768, 4
      %v771 = vshll.u32 %v691, 16
      %v773 = vrot.slane %v771, 5
      %v774 = vor.u32 %v770, %v773
      %v775 = vrot.slane %v774, 4
      %v777 = vshll.u32 %v692, 16
      %v779 = vrot.slane %v777, 5
      %v780 = vsel %vm243, %v775, %v779
      %v782 = vshrl.u32 %v693, 16
      %v784 = vrot.slane %v782, 4
      %v785 = vshll.u32 %v693, 16
      %v787 = vrot.slane %v785, 5
      %v788 = vor.u32 %v784, %v787
      %v789 = vrot.slane %v788, 4
      %v791 = vshll.u32 %v694, 16
      %v793 = vrot.slane %v791, 5
      %v794 = vsel %vm243, %v789, %v793
      %v796 = vshrl.u32 %v695, 16
      %v798 = vrot.slane %v796, 4
      %v799 = vshll.u32 %v695, 16
      %v801 = vrot.slane %v799, 5
      %v802 = vor.u32 %v798, %v801
      %v803 = vrot.slane %v802, 4
      %v805 = vshll.u32 %v696, 16
      %v807 = vrot.slane %v805, 5
      %v808 = vsel %vm243, %v803, %v807
      %s809 = scalar_lea.vmem %s210, 24
      %v810 = vld [vmem:[%s809] sm:$0xf]
      %v811 = vld [vmem:[%s809 + $0x4] sm:$0xf]
      %v812 = vunpack.c.l.b16 %v710
      %v813 = vunpack.c.l.b16 %v724
      %v814 = vunpack.c.l.b16 %v738
      %v815 = vunpack.c.l.b16 %v752
      %v816 = vunpack.c.l.b16 %v766
      %v817 = vunpack.c.l.b16 %v780
      %v818 = vunpack.c.l.b16 %v794
      %v819 = vunpack.c.l.b16 %v808
      %v820 = vpack.c.b16 %v813, %v812
      %v821 = vpack.c.b16 %v815, %v814
      %v822 = vpack.c.b16 %v817, %v816
      %v823 = vpack.c.b16 %v819, %v818
      %v826 = vunpack.c.l.b16 %v810
      %v827 = vunpack.c.l.b16 %v811
      %v828 = vpack.c.b16 %v827, %v826
      %v831 = vsel %vm377, %v820, 0
      %v834 = vsel %vm377, %v821, 0
      %v837 = vsel %vm377, %v822, 0
      %v840 = vsel %vm377, %v823, 0
      %842 = vmatprep.subr.bf16.mxu0 0
      %843 = vmatpush1.bf16.msra.mxu0 0
      %844 = vmatprep.subr.bf16.mxu0 0
      %845 = vmatpush1.bf16.msra.mxu0 0
      %846 = vmatprep.subr.bf16.mxu0 0
      %847 = vmatpush1.bf16.msra.mxu0 0
      %848 = vmatprep.subr.bf16.mxu0 0
      %849 = vmatpush1.bf16.msra.mxu0 0
      %850 = vmatprep.subr.bf16.mxu0 0
      %851 = vmatpush1.bf16.msra.mxu0 0
      %852 = vmatprep.subr.bf16.mxu0 0
      %853 = vmatpush1.bf16.msra.mxu0 0
      %854 = vmatprep.subr.bf16.mxu0 0
      %855 = vmatpush1.bf16.msra.mxu0 0
      %856 = vmatprep.subr.bf16.mxu0 0
      %857 = vmatpush1.bf16.msra.mxu0 %v828
      %858 = vmatprep.subr.bf16.mxu0 0
      %859 = vmatpush2.bf16.msra.mxu0 0
      %860 = vmatprep.subr.bf16.mxu0 0
      %861 = vmatpush2.bf16.msra.mxu0 0
      %862 = vmatprep.subr.bf16.mxu0 0
      %863 = vmatpush2.bf16.msra.mxu0 0
      %864 = vmatprep.subr.bf16.mxu0 0
      %865 = vmatpush2.bf16.msra.mxu0 0
      %866 = vmatprep.subr.bf16.mxu0 0
      %867 = vmatpush2.bf16.msra.mxu0 0
      %868 = vmatprep.subr.bf16.mxu0 0
      %869 = vmatpush2.bf16.msra.mxu0 0
      %870 = vmatprep.subr.bf16.mxu0 0
      %871 = vmatpush2.bf16.msra.mxu0 0
      %872 = vmatprep.subr.bf16.mxu0 0
      %873 = vmatpush2.bf16.msra.mxu0 0
      %874 = vmatprep.mubr.bf16.mxu0 0
      %875 = vmatmul.mubr.bf16.gmra.mxu0 %v831
      %v876 = vpop.f32.mrf.mxu0
      %v877 = vadd.f32 0.0, %v876
      %v878 = vpop.f32.mrf.mxu0
      %v879 = vpop.f32.mrf.mxu0
      %v880 = vadd.f32 0.0, %v879
      %v881 = vpop.f32.mrf.mxu0
      %882 = vmatprep.mubr.bf16.mxu0 0
      %883 = vmatmul.mubr.bf16.gmra.mxu0 %v834
      %v884 = vpop.f32.mrf.mxu0
      %v885 = vadd.f32 0.0, %v884
      %v886 = vpop.f32.mrf.mxu0
      %v887 = vpop.f32.mrf.mxu0
      %v888 = vadd.f32 0.0, %v887
      %v889 = vpop.f32.mrf.mxu0
      %890 = vmatprep.mubr.bf16.mxu0 0
      %891 = vmatmul.mubr.bf16.gmra.mxu0 %v837
      %v892 = vpop.f32.mrf.mxu0
      %v893 = vadd.f32 0.0, %v892
      %v894 = vpop.f32.mrf.mxu0
      %v895 = vpop.f32.mrf.mxu0
      %v896 = vadd.f32 0.0, %v895
      %v897 = vpop.f32.mrf.mxu0
      %898 = vmatprep.mubr.bf16.mxu0 0
      %899 = vmatmul.mubr.bf16.gmra.mxu0 %v840
      %v900 = vpop.f32.mrf.mxu0
      %v901 = vadd.f32 0.0, %v900
      %v902 = vpop.f32.mrf.mxu0
      %v903 = vpop.f32.mrf.mxu0
      %v904 = vadd.f32 0.0, %v903
      %v905 = vpop.f32.mrf.mxu0
      %906 = vdwg.mxu0
      %v907 = vadd.f32 %v673, %v877
      %v908 = vadd.f32 %v674, %v880
      %v909 = vadd.f32 %v675, %v885
      %v910 = vadd.f32 %v676, %v888
      %v911 = vadd.f32 %v677, %v893
      %v912 = vadd.f32 %v678, %v896
      %v913 = vadd.f32 %v679, %v901
      %v914 = vadd.f32 %v680, %v904
      %v915 = vld [vmem:[%s213] sm:$0x1]
      %v917 = vlaneseq
      %v918 = vshrl.u32 %v917, 7
      %v919 = vsub.s32 0, %v918
      %v920 = vrot.slane %v915, %v919
      %v922 = vadd.f32 %v907, %v920
      %v923 = vadd.f32 %v908, %v920
      %v924 = vadd.f32 %v909, %v920
      %v925 = vadd.f32 %v910, %v920
      %v926 = vadd.f32 %v911, %v920
      %v927 = vadd.f32 %v912, %v920
      %v928 = vadd.f32 %v913, %v920
      %v929 = vadd.f32 %v914, %v920
      %v930 = vmul.f32 %v922, 0.1
      %v931 = vmul.f32 %v923, 0.1
      %v932 = vmul.f32 %v924, 0.1
      %v933 = vmul.f32 %v925, 0.1
      %v934 = vmul.f32 %v926, 0.1
      %v935 = vmul.f32 %v927, 0.1
      %v936 = vmul.f32 %v928, 0.1
      %v937 = vmul.f32 %v929, 0.1
      %v938 = vmax.f32 %v922, %v930
      %v939 = vmax.f32 %v923, %v931
      %v940 = vmax.f32 %v924, %v932
      %v941 = vmax.f32 %v925, %v933
      %v942 = vmax.f32 %v926, %v934
      %v943 = vmax.f32 %v927, %v935
      %v944 = vmax.f32 %v928, %v936
      %v945 = vmax.f32 %v929, %v937
      %v946 = vpack.c.bf16 %v939, %v938
      %v947 = vpack.c.bf16 %v941, %v940
      %v948 = vpack.c.bf16 %v943, %v942
      %v949 = vpack.c.bf16 %v945, %v944
      %v954 = vunpack.c.l.b16 %v946
      %v955 = vunpack.c.h.b16 %v946
      %v956 = vunpack.c.l.b16 %v947
      %v957 = vunpack.c.h.b16 %v947
      %v958 = vunpack.c.l.b16 %v948
      %v959 = vunpack.c.h.b16 %v948
      %v960 = vunpack.c.l.b16 %v949
      %v961 = vunpack.c.h.b16 %v949
      %v962 = vpack.c.b16 %v954, %v954
      %v963 = vpack.c.b16 %v955, %v955
      %v964 = vpack.c.b16 %v956, %v956
      %v965 = vpack.c.b16 %v957, %v957
      %v966 = vpack.c.b16 %v958, %v958
      %v967 = vpack.c.b16 %v959, %v959
      %v968 = vpack.c.b16 %v960, %v960
      %v969 = vpack.c.b16 %v961, %v961
      %978 = vst [vmem:[%s221] sm:$0xf] %v962
      %979 = vst [vmem:[%s221 + $0x4] sm:$0xf] %v963
      %980 = vst [vmem:[%s221 + $0x8] sm:$0xf] %v964
      %981 = vst [vmem:[%s221 + $0xc] sm:$0xf] %v965
      %982 = vst [vmem:[%s221 + $0x10] sm:$0xf] %v966
      %983 = vst [vmem:[%s221 + $0x14] sm:$0xf] %v967
      %984 = vst [vmem:[%s221 + $0x18] sm:$0xf] %v968
      %985 = vst [vmem:[%s221 + $0x1c] sm:$0xf] %v969
      %p986 = scmp.lt.s32.totalorder %s18, 1
      %s987 = scalar_select %p986, %s18, 1
      %p988 = scmp.lt.s32.totalorder %s19, 0
      %s989 = scalar_select %p988, %s19, 0
      %s990 = smul.addr %s987, 8
      %s991 = sadd.s32 %s989, %s990
      %s992 = smul.addr %s991, 4
      %s993 = scalar_lea.vmem %s3, %s992
      // Predicated region
      $region33: #{down_block_forward.2} parent=31 // pred_check
        %p994 = pneg %p124
      $region34: #{down_block_forward.2} parent=31 // pred_check_branch
        %996 = sbr.rel (%p994) target = $region36
      $region35: #{down_block_forward.2} parent=31 // pred_region
        _
      $region36: #{down_block_forward.2} parent=31 // pred_fallthru
        _
    $region32: #{down_block_forward.2} parent=5 // pred_fallthru
      _
    %p997 = scmp.le.s32.totalorder 2, %s9
    // Predicated region
    $region37: #{down_block_forward.2} parent=5 // pred_check
      %p998 = pneg %p997
    $region38: #{down_block_forward.2} parent=5 // pred_check_branch
      %1000 = sbr.rel (%p998) target = $region40
    $region39: #{down_block_forward.2} parent=5 // pred_region
      %s1001 = ssub.s32 %s9, 2
      // Predicated region
      $region41: #{down_block_forward.2} parent=39 // pred_check
        %p1002 = pneg %p130
      $region42: #{down_block_forward.2} parent=39 // pred_check_branch
        %1004 = sbr.rel (%p1002) target = $region44
      $region43: #{down_block_forward.2} parent=39 // pred_region
        %p1005 = scmp.lt.s32.totalorder %s20, 1
        %s1006 = scalar_select %p1005, %s20, 1
        %p1007 = scmp.lt.s32.totalorder %s21, 0
        %s1008 = scalar_select %p1007, %s21, 0
        %s1009 = smul.addr %s1006, 8
        %s1010 = sadd.s32 %s1008, %s1009
        %s1011 = smul.addr %s1010, 4
        %s1012 = scalar_lea.vmem %s3, %s1011
      $region44: #{down_block_forward.2} parent=39 // pred_fallthru
        _
    $region40: #{down_block_forward.2} parent=5 // pred_fallthru
      _
  $region6: #{down_block_forward.2} parent=0 // loop_footer
    %s13 = sadd.s32 1, %s9
  $region7: #{down_block_forward.2} parent=0 // loop_footer_branch
    %8 = sbr.rel target = $region3
  $region8: #{down_block_forward.2} parent=0 // loop_exit
    _

// kernel: down_block_forward.3
$region0: #{down_block_forward.3}
  #allocation0 [shape = 'u32[]', space=smem, size = 0x4, offset = 0x4, fixed_abs, tag = 'smem constant byte address 0x4 - core index']
  #allocation1 [shape = 'u32[144,128]{1,0:T(1,128)}', space=vmem, size = 0x12000, scoped, tag = 'internal scratch']
  %s0 = inlined_call_operand.vmem [shape: bf16[2,10,10,128], index: 0, kind: input, shape index: {}]
  %s1 = inlined_call_operand.vmem [shape: bf16[9,128,128], index: 1, kind: input, shape index: {}]
  %s2 = inlined_call_operand.vmem [shape: f32[1,128], index: 2, kind: input, shape index: {}]
  %s3 = inlined_call_operand.vmem [shape: f32[2,64,128], index: 3, kind: output, shape index: {}]
  %s4 = sld [smem:[#allocation0]]
  $region45: #{down_block_forward.3} parent=0
    _
  %s6 = ssub.s32 1, %s4
  %s7 = scalar_select 0, %s6, %s4
  loop: start=0, step=1, limit=4
  $region2: #{down_block_forward.3} parent=0 // loop_pre_header
    _
  $region3: #{down_block_forward.3} parent=0 // loop_header
    %s9 = sphi 0, %s13
    %p10 = scmp.ge.s32.totalorder %s9, 4
    %s16 = sphi 0, %s28
    %s17 = sphi 0, %s24
    %s18 = sphi 0, %s16
    %s19 = sphi 0, %s17
    %s20 = sphi 0, %s18
    %s21 = sphi 0, %s19
    %s31 = sphi 0, %s33
    %s34 = sphi 0, %s31
    %s35 = sphi 0, %s34
    %s51 = sphi 0, %s35
    %s57 = sphi 0, %s59
    %s60 = sphi 0, %s57
    %s61 = sphi 0, %s60
    %s77 = sphi 0, %s61
    %s83 = sphi 0, %s85
    %s86 = sphi 0, %s83
    %s87 = sphi 0, %s86
    %s103 = sphi 0, %s87
    %s111 = sphi 0, %s113
    %s114 = sphi 0, %s111
    %s115 = sphi 0, %s114
    %s131 = sphi 0, %s115
  $region4: #{down_block_forward.3} parent=0 // loop_header_branch
    %12 = sbr.rel (%p10) target = $region8
  $region5: #{down_block_forward.3} parent=0 // loop_body
    %s14 = ssub.s32 %s9, 1
    %s15 = ssub.s32 %s9, 2
    %s22 = sadd.s32 1, %s17
    %p23 = scmp.ge.s32.totalorder %s22, 1
    %s24 = scalar_select %p23, 0, %s22
    %s25 = sadd.s32 1, %s16
    %s26 = scalar_select %p23, %s25, %s16
    %p27 = scmp.ge.s32.totalorder %s26, 2
    %s28 = scalar_select %p27, 0, %s26
    %s29 = ssub.s32 %s16, %s28
    %p30 = scmp.eq.s32.totalorder %s29, 0
    %s32 = sadd.s32 %s31, 1
    %s33 = scalar_select %p30, %s31, %s32
    %p36 = pneg %p30
    %p37 = scmp.eq.s32.totalorder %s9, 1
    %p38 = por %p36, %p37
    %p39 = scmp.ne.s32.totalorder %s31, %s34
    %p40 = scmp.eq.s32.totalorder %s9, 0
    %p41 = por %p39, %p40
    %p42 = scmp.ne.s32.totalorder %s31, %s34
    %p43 = scmp.eq.s32.totalorder %s14, 1
    %p44 = por %p42, %p43
    %p45 = scmp.ne.s32.totalorder %s34, %s35
    %p46 = scmp.eq.s32.totalorder %s14, 0
    %p47 = por %p45, %p46
    %p48 = scmp.ne.s32.totalorder %s34, %s35
    %p49 = scmp.eq.s32.totalorder %s15, 1
    %p50 = por %p48, %p49
    %p52 = scmp.ne.s32.totalorder %s35, %s51
    %p53 = scmp.eq.s32.totalorder %s15, 0
    %p54 = por %p52, %p53
    %s55 = ssub.s32 %s17, %s24
    %p56 = scmp.eq.s32.totalorder %s55, 0
    %s58 = sadd.s32 %s57, 1
    %s59 = scalar_select %p56, %s57, %s58
    %p62 = pneg %p56
    %p63 = scmp.eq.s32.totalorder %s9, 1
    %p64 = por %p62, %p63
    %p65 = scmp.ne.s32.totalorder %s57, %s60
    %p66 = scmp.eq.s32.totalorder %s9, 0
    %p67 = por %p65, %p66
    %p68 = scmp.ne.s32.totalorder %s57, %s60
    %p69 = scmp.eq.s32.totalorder %s14, 1
    %p70 = por %p68, %p69
    %p71 = scmp.ne.s32.totalorder %s60, %s61
    %p72 = scmp.eq.s32.totalorder %s14, 0
    %p73 = por %p71, %p72
    %p74 = scmp.ne.s32.totalorder %s60, %s61
    %p75 = scmp.eq.s32.totalorder %s15, 1
    %p76 = por %p74, %p75
    %p78 = scmp.ne.s32.totalorder %s61, %s77
    %p79 = scmp.eq.s32.totalorder %s15, 0
    %p80 = por %p78, %p79
    %s81 = ssub.s32 %s17, %s24
    %p82 = scmp.eq.s32.totalorder %s81, 0
    %s84 = sadd.s32 %s83, 1
    %s85 = scalar_select %p82, %s83, %s84
    %p88 = pneg %p82
    %p89 = scmp.eq.s32.totalorder %s9, 1
    %p90 = por %p88, %p89
    %p91 = scmp.ne.s32.totalorder %s83, %s86
    %p92 = scmp.eq.s32.totalorder %s9, 0
    %p93 = por %p91, %p92
    %p94 = scmp.ne.s32.totalorder %s83, %s86
    %p95 = scmp.eq.s32.totalorder %s14, 1
    %p96 = por %p94, %p95
    %p97 = scmp.ne.s32.totalorder %s86, %s87
    %p98 = scmp.eq.s32.totalorder %s14, 0
    %p99 = por %p97, %p98
    %p100 = scmp.ne.s32.totalorder %s86, %s87
    %p101 = scmp.eq.s32.totalorder %s15, 1
    %p102 = por %p100, %p101
    %p104 = scmp.ne.s32.totalorder %s87, %s103
    %p105 = scmp.eq.s32.totalorder %s15, 0
    %p106 = por %p104, %p105
    %s107 = ssub.s32 %s16, %s28
    %s108 = ssub.s32 %s17, %s24
    %s109 = sor.u32 %s107, %s108
    %p110 = scmp.eq.s32.totalorder %s109, 0
    %s112 = sadd.s32 %s111, 1
    %s113 = scalar_select %p110, %s111, %s112
    %p116 = pneg %p110
    %p117 = scmp.eq.s32.totalorder %s9, 1
    %p118 = por %p116, %p117
    %p119 = scmp.ne.s32.totalorder %s111, %s114
    %p120 = scmp.eq.s32.totalorder %s9, 0
    %p121 = por %p119, %p120
    %p122 = scmp.ne.s32.totalorder %s111, %s114
    %p123 = scmp.eq.s32.totalorder %s14, 1
    %p124 = por %p122, %p123
    %p125 = scmp.ne.s32.totalorder %s114, %s115
    %p126 = scmp.eq.s32.totalorder %s14, 0
    %p127 = por %p125, %p126
    %p128 = scmp.ne.s32.totalorder %s114, %s115
    %p129 = scmp.eq.s32.totalorder %s15, 1
    %p130 = por %p128, %p129
    %p132 = scmp.ne.s32.totalorder %s115, %s131
    %p133 = scmp.eq.s32.totalorder %s15, 0
    %p134 = por %p132, %p133
    %p135 = scmp.le.s32.totalorder 1, %s9
    %p136 = scmp.lt.s32.totalorder %s9, 3
    %p137 = pnand %p135, %p136
    %p138 = pneg %p137
    // Predicated region
    $region9: #{down_block_forward.3} parent=5 // pred_check
      _
    $region10: #{down_block_forward.3} parent=5 // pred_check_branch
      %140 = sbr.rel (%p137) target = $region12
    $region11: #{down_block_forward.3} parent=5 // pred_region
      %s141 = ssub.s32 %s9, 1
      // Predicated region
      $region13: #{down_block_forward.3} parent=11 // pred_check
        %p142 = pneg %p73
      $region14: #{down_block_forward.3} parent=11 // pred_check_branch
        %144 = sbr.rel (%p142) target = $region16
      $region15: #{down_block_forward.3} parent=11 // pred_region
        %p145 = scmp.lt.s32.totalorder %s19, 0
        %s146 = scalar_select %p145, %s19, 0
        %s147 = smul.addr %s146, 4
        %s148 = scalar_lea.vmem %s1, %s147
      $region16: #{down_block_forward.3} parent=11 // pred_fallthru
        _
      // Predicated region
      $region17: #{down_block_forward.3} parent=11 // pred_check
        %p149 = pneg %p99
      $region18: #{down_block_forward.3} parent=11 // pred_check_branch
        %151 = sbr.rel (%p149) target = $region20
      $region19: #{down_block_forward.3} parent=11 // pred_region
        %p152 = scmp.lt.s32.totalorder %s19, 0
        %s153 = scalar_select %p152, %s19, 0
        %s154 = scalar_lea.vmem %s2, %s153
      $region20: #{down_block_forward.3} parent=11 // pred_fallthru
        _
    $region12: #{down_block_forward.3} parent=5 // pred_fallthru
      _
    %p155 = scmp.lt.s32.totalorder %s9, 2
    // Predicated region
    $region21: #{down_block_forward.3} parent=5 // pred_check
      %p156 = pneg %p155
    $region22: #{down_block_forward.3} parent=5 // pred_check_branch
      %158 = sbr.rel (%p156) target = $region24
    $region23: #{down_block_forward.3} parent=5 // pred_region
      // Predicated region
      $region25: #{down_block_forward.3} parent=23 // pred_check
        %p159 = pneg %p41
      $region26: #{down_block_forward.3} parent=23 // pred_check_branch
        %161 = sbr.rel (%p159) target = $region28
      $region27: #{down_block_forward.3} parent=23 // pred_region
        %p162 = scmp.lt.s32.totalorder %s16, 1
        %s163 = scalar_select %p162, %s16, 1
        %s164 = smul.addr %s163, 20
        %s165 = smul.addr %s164, 4
        %s166 = scalar_lea.vmem %s0, %s165
      $region28: #{down_block_forward.3} parent=23 // pred_fallthru
        _
    $region24: #{down_block_forward.3} parent=5 // pred_fallthru
      _
    %p167 = scmp.le.s32.totalorder 1, %s9
    %p168 = scmp.lt.s32.totalorder %s9, 3
    %p169 = pnand %p167, %p168
    %p170 = pneg %p169
    // Predicated region
    $region29: #{down_block_forward.3} parent=5 // pred_check
      _
    $region30: #{down_block_forward.3} parent=5 // pred_check_branch
      %172 = sbr.rel (%p169) target = $region32
    $region31: #{down_block_forward.3} parent=5 // pred_region
      %s173 = ssub.s32 %s9, 1
      %p174 = scmp.lt.s32.totalorder %s18, 1
      %s175 = scalar_select %p174, %s18, 1
      %s176 = smul.addr %s175, 20
      %s177 = smul.addr %s176, 4
      %s178 = scalar_lea.vmem %s0, %s177
      %p179 = pneg %p47
      %p180 = pneg %p44
      %p181 = scmp.lt.s32.totalorder %s19, 0
      %s182 = scalar_select %p181, %s19, 0
      %s183 = smul.addr %s182, 4
      %s184 = scalar_lea.vmem %s1, %s183
      %p185 = pneg %p73
      %p186 = pneg %p70
      %p187 = scmp.lt.s32.totalorder %s19, 0
      %s188 = scalar_select %p187, %s19, 0
      %s189 = scalar_lea.vmem %s2, %s188
      %p190 = pneg %p99
      %p191 = pneg %p96
      %p192 = pneg %p127
      %p193 = pneg %p124
      %p194 = scmp.lt.s32.totalorder %s18, 1
      %s195 = scalar_select %p194, %s18, 1
      %p196 = scmp.lt.s32.totalorder %s19, 0
      %s197 = scalar_select %p196, %s19, 0
      %s198 = smul.addr %s195, 8
      %s199 = sadd.s32 %s197, %s198
      %s200 = smul.addr %s199, 8
      %s201 = scalar_lea.vmem %s3, %s200
      %p202 = scmp.lt.s32.totalorder %s18, 1
      %s203 = scalar_select %p202, %s18, 1
      %s204 = smul.addr %s203, 20
      %s205 = smul.addr %s204, 4
      %s206 = scalar_lea.vmem %s0, %s205
      %p207 = scmp.lt.s32.totalorder %s19, 0
      %s208 = scalar_select %p207, %s19, 0
      %s209 = smul.addr %s208, 4
      %s210 = scalar_lea.vmem %s1, %s209
      %p211 = scmp.lt.s32.totalorder %s19, 0
      %s212 = scalar_select %p211, %s19, 0
      %s213 = scalar_lea.vmem %s2, %s212
      %p214 = scmp.lt.s32.totalorder %s18, 1
      %s215 = scalar_select %p214, %s18, 1
      %p216 = scmp.lt.s32.totalorder %s19, 0
      %s217 = scalar_select %p216, %s19, 0
      %s218 = smul.addr %s215, 8
      %s219 = sadd.s32 %s217, %s218
      %s220 = smul.addr %s219, 8
      %s221 = scalar_lea.vmem %s3, %s220
      %v223 = vld [vmem:[%s206] sm:$0xf]
      %v224 = vld [vmem:[%s206 + $0x8] sm:$0xf]
      %v225 = vld [vmem:[%s206 + $0x10] sm:$0xf]
      %v226 = vld [vmem:[%s206 + $0x18] sm:$0xf]
      %v227 = vld [vmem:[%s206 + $0x20] sm:$0xf]
      %v228 = vld [vmem:[%s206 + $0x28] sm:$0xf]
      %v229 = vld [vmem:[%s206 + $0x30] sm:$0xf]
      %v230 = vld [vmem:[%s206 + $0x38] sm:$0xf]
      %v231 = vld [vmem:[%s210] sm:$0xf]
      %v232 = vld [vmem:[%s210 + $0x4] sm:$0xf]
      %v233 = vld [vmem:[%s210 + $0x8] sm:$0xf]
      %v234 = vld [vmem:[%s210 + $0xc] sm:$0xf]
      %v235 = vld [vmem:[%s210 + $0x10] sm:$0xf]
      %v236 = vld [vmem:[%s210 + $0x14] sm:$0xf]
      %v237 = vld [vmem:[%s210 + $0x18] sm:$0xf]
      %v238 = vld [vmem:[%s210 + $0x1c] sm:$0xf]
      %v239 = vld [vmem:[%s210 + $0x20] sm:$0xf]
      %v240 = vld [vmem:[%s210 + $0x24] sm:$0xf]
      %v241 = vld [vmem:[%s210 + $0x28] sm:$0xf]
      %v242 = vld [vmem:[%s210 + $0x2c] sm:$0xf]
      %v243 = vld [vmem:[%s210 + $0x30] sm:$0xf]
      %v244 = vld [vmem:[%s210 + $0x34] sm:$0xf]
      %v245 = vld [vmem:[%s210 + $0x38] sm:$0xf]
      %v246 = vld [vmem:[%s210 + $0x3c] sm:$0xf]
      %v247 = vld [vmem:[%s206 + $0x4] sm:$0x1]
      %v248 = vld [vmem:[%s206 + $0xc] sm:$0x1]
      %v249 = vld [vmem:[%s206 + $0x14] sm:$0x1]
      %v250 = vld [vmem:[%s206 + $0x1c] sm:$0x1]
      %v251 = vld [vmem:[%s206 + $0x24] sm:$0x1]
      %v252 = vld [vmem:[%s206 + $0x2c] sm:$0x1]
      %v253 = vld [vmem:[%s206 + $0x34] sm:$0x1]
      %v254 = vld [vmem:[%s206 + $0x3c] sm:$0x1]
      %vm255 = vsmask.f32 3328
      %vm256 = vsmask.f32 7440
      %vm257 = vmor %vm255, %vm256
      %v259 = vshrl.u32 %v223, 16
      %v261 = vrot.slane %v259, 4
      %v262 = vshll.u32 %v223, 16
      %v264 = vrot.slane %v262, 5
      %v265 = vor.u32 %v261, %v264
      %v266 = vrot.slane %v265, 4
      %v268 = vshll.u32 %v247, 16
      %v270 = vrot.slane %v268, 5
      %v271 = vsel %vm257, %v266, %v270
      %v273 = vshrl.u32 %v224, 16
      %v275 = vrot.slane %v273, 4
      %v276 = vshll.u32 %v224, 16
      %v278 = vrot.slane %v276, 5
      %v279 = vor.u32 %v275, %v278
      %v280 = vrot.slane %v279, 4
      %v282 = vshll.u32 %v248, 16
      %v284 = vrot.slane %v282, 5
      %v285 = vsel %vm257, %v280, %v284
      %v287 = vshrl.u32 %v225, 16
      %v289 = vrot.slane %v287, 4
      %v290 = vshll.u32 %v225, 16
      %v292 = vrot.slane %v290, 5
      %v293 = vor.u32 %v289, %v292
      %v294 = vrot.slane %v293, 4
      %v296 = vshll.u32 %v249, 16
      %v298 = vrot.slane %v296, 5
      %v299 = vsel %vm257, %v294, %v298
      %v301 = vshrl.u32 %v226, 16
      %v303 = vrot.slane %v301, 4
      %v304 = vshll.u32 %v226, 16
      %v306 = vrot.slane %v304, 5
      %v307 = vor.u32 %v303, %v306
      %v308 = vrot.slane %v307, 4
      %v310 = vshll.u32 %v250, 16
      %v312 = vrot.slane %v310, 5
      %v313 = vsel %vm257, %v308, %v312
      %v315 = vshrl.u32 %v227, 16
      %v317 = vrot.slane %v315, 4
      %v318 = vshll.u32 %v227, 16
      %v320 = vrot.slane %v318, 5
      %v321 = vor.u32 %v317, %v320
      %v322 = vrot.slane %v321, 4
      %v324 = vshll.u32 %v251, 16
      %v326 = vrot.slane %v324, 5
      %v327 = vsel %vm257, %v322, %v326
      %v329 = vshrl.u32 %v228, 16
      %v331 = vrot.slane %v329, 4
      %v332 = vshll.u32 %v228, 16
      %v334 = vrot.slane %v332, 5
      %v335 = vor.u32 %v331, %v334
      %v336 = vrot.slane %v335, 4
      %v338 = vshll.u32 %v252, 16
      %v340 = vrot.slane %v338, 5
      %v341 = vsel %vm257, %v336, %v340
      %v343 = vshrl.u32 %v229, 16
      %v345 = vrot.slane %v343, 4
      %v346 = vshll.u32 %v229, 16
      %v348 = vrot.slane %v346, 5
      %v349 = vor.u32 %v345, %v348
      %v350 = vrot.slane %v349, 4
      %v352 = vshll.u32 %v253, 16
      %v354 = vrot.slane %v352, 5
      %v355 = vsel %vm257, %v350, %v354
      %v357 = vshrl.u32 %v230, 16
      %v359 = vrot.slane %v357, 4
      %v360 = vshll.u32 %v230, 16
      %v362 = vrot.slane %v360, 5
      %v363 = vor.u32 %v359, %v362
      %v364 = vrot.slane %v363, 4
      %v366 = vshll.u32 %v254, 16
      %v368 = vrot.slane %v366, 5
      %v369 = vsel %vm257, %v364, %v368
      %s370 = scalar_lea.vmem %s210, 64
      %v371 = vld [vmem:[%s370] sm:$0xf]
      %v372 = vld [vmem:[%s370 + $0x4] sm:$0xf]
      %v373 = vld [vmem:[%s370 + $0x8] sm:$0xf]
      %v374 = vld [vmem:[%s370 + $0xc] sm:$0xf]
      %v375 = vld [vmem:[%s370 + $0x10] sm:$0xf]
      %v376 = vld [vmem:[%s370 + $0x14] sm:$0xf]
      %v377 = vld [vmem:[%s370 + $0x18] sm:$0xf]
      %v378 = vld [vmem:[%s370 + $0x1c] sm:$0xf]
      %v379 = vld [vmem:[%s370 + $0x20] sm:$0xf]
      %v380 = vld [vmem:[%s370 + $0x24] sm:$0xf]
      %v381 = vld [vmem:[%s370 + $0x28] sm:$0xf]
      %v382 = vld [vmem:[%s370 + $0x2c] sm:$0xf]
      %v383 = vld [vmem:[%s370 + $0x30] sm:$0xf]
      %v384 = vld [vmem:[%s370 + $0x34] sm:$0xf]
      %v385 = vld [vmem:[%s370 + $0x38] sm:$0xf]
      %v386 = vld [vmem:[%s370 + $0x3c] sm:$0xf]
      %v387 = vunpack.c.l.b16 %v271
      %v388 = vunpack.c.l.b16 %v285
      %v389 = vunpack.c.l.b16 %v299
      %v390 = vunpack.c.l.b16 %v313
      %v391 = vunpack.c.l.b16 %v327
      %v392 = vunpack.c.l.b16 %v341
      %v393 = vunpack.c.l.b16 %v355
      %v394 = vunpack.c.l.b16 %v369
      %v395 = vpack.c.b16 %v388, %v387
      %v396 = vpack.c.b16 %v390, %v389
      %v397 = vpack.c.b16 %v392, %v391
      %v398 = vpack.c.b16 %v394, %v393
      %v419 = vunpack.c.l.b16 %v371
      %v420 = vunpack.c.l.b16 %v372
      %v421 = vunpack.c.l.b16 %v373
      %v422 = vunpack.c.l.b16 %v374
      %v423 = vunpack.c.l.b16 %v375
      %v424 = vunpack.c.l.b16 %v376
      %v425 = vunpack.c.l.b16 %v377
      %v426 = vunpack.c.l.b16 %v378
      %v427 = vunpack.c.l.b16 %v379
      %v428 = vunpack.c.l.b16 %v380
      %v429 = vunpack.c.l.b16 %v381
      %v430 = vunpack.c.l.b16 %v382
      %v431 = vunpack.c.l.b16 %v383
      %v432 = vunpack.c.l.b16 %v384
      %v433 = vunpack.c.l.b16 %v385
      %v434 = vunpack.c.l.b16 %v386
      %v435 = vpack.c.b16 %v420, %v419
      %v436 = vpack.c.b16 %v422, %v421
      %v437 = vpack.c.b16 %v424, %v423
      %v438 = vpack.c.b16 %v426, %v425
      %v439 = vpack.c.b16 %v428, %v427
      %v440 = vpack.c.b16 %v430, %v429
      %v441 = vpack.c.b16 %v432, %v431
      %v442 = vpack.c.b16 %v434, %v433
      %451 = vmatprep.subr.bf16.mxu0 0
      %452 = vmatpush1.bf16.msra.mxu0 %v442
      %453 = vmatprep.subr.bf16.mxu0 0
      %454 = vmatpush1.bf16.msra.mxu0 %v441
      %455 = vmatprep.subr.bf16.mxu0 0
      %456 = vmatpush1.bf16.msra.mxu0 %v440
      %457 = vmatprep.subr.bf16.mxu0 0
      %458 = vmatpush1.bf16.msra.mxu0 %v439
      %459 = vmatprep.subr.bf16.mxu0 0
      %460 = vmatpush1.bf16.msra.mxu0 %v438
      %461 = vmatprep.subr.bf16.mxu0 0
      %462 = vmatpush1.bf16.msra.mxu0 %v437
      %463 = vmatprep.subr.bf16.mxu0 0
      %464 = vmatpush1.bf16.msra.mxu0 %v436
      %465 = vmatprep.subr.bf16.mxu0 0
      %466 = vmatpush1.bf16.msra.mxu0 %v435
      %467 = vmatprep.subr.bf16.mxu0 0
      %468 = vmatpush2.bf16.msra.mxu0 0
      %469 = vmatprep.subr.bf16.mxu0 0
      %470 = vmatpush2.bf16.msra.mxu0 0
      %471 = vmatprep.subr.bf16.mxu0 0
      %472 = vmatpush2.bf16.msra.mxu0 0
      %473 = vmatprep.subr.bf16.mxu0 0
      %474 = vmatpush2.bf16.msra.mxu0 0
      %475 = vmatprep.subr.bf16.mxu0 0
      %476 = vmatpush2.bf16.msra.mxu0 0
      %477 = vmatprep.subr.bf16.mxu0 0
      %478 = vmatpush2.bf16.msra.mxu0 0
      %479 = vmatprep.subr.bf16.mxu0 0
      %480 = vmatpush2.bf16.msra.mxu0 0
      %481 = vmatprep.subr.bf16.mxu0 0
      %482 = vmatpush2.bf16.msra.mxu0 0
      %483 = vmatprep.mubr.bf16.mxu0 0
      %484 = vmatmul.mubr.bf16.gmra.mxu0 %v395
      %v485 = vpop.f32.mrf.mxu0
      %v486 = vadd.f32 0.0, %v485
      %v487 = vpop.f32.mrf.mxu0
      %v488 = vpop.f32.mrf.mxu0
      %v489 = vadd.f32 0.0, %v488
      %v490 = vpop.f32.mrf.mxu0
      %491 = vmatprep.mubr.bf16.mxu0 0
      %492 = vmatmul.mubr.bf16.gmra.mxu0 %v396
      %v493 = vpop.f32.mrf.mxu0
      %v494 = vadd.f32 0.0, %v493
      %v495 = vpop.f32.mrf.mxu0
      %v496 = vpop.f32.mrf.mxu0
      %v497 = vadd.f32 0.0, %v496
      %v498 = vpop.f32.mrf.mxu0
      %499 = vmatprep.mubr.bf16.mxu0 0
      %500 = vmatmul.mubr.bf16.gmra.mxu0 %v397
      %v501 = vpop.f32.mrf.mxu0
      %v502 = vadd.f32 0.0, %v501
      %v503 = vpop.f32.mrf.mxu0
      %v504 = vpop.f32.mrf.mxu0
      %v505 = vadd.f32 0.0, %v504
      %v506 = vpop.f32.mrf.mxu0
      %507 = vmatprep.mubr.bf16.mxu0 0
      %508 = vmatmul.mubr.bf16.gmra.mxu0 %v398
      %v509 = vpop.f32.mrf.mxu0
      %v510 = vadd.f32 0.0, %v509
      %v511 = vpop.f32.mrf.mxu0
      %v512 = vpop.f32.mrf.mxu0
      %v513 = vadd.f32 0.0, %v512
      %v514 = vpop.f32.mrf.mxu0
      %515 = vdwg.mxu0
      %v524 = vunpack.c.l.b16 %v223
      %v525 = vunpack.c.l.b16 %v224
      %v526 = vunpack.c.l.b16 %v225
      %v527 = vunpack.c.l.b16 %v226
      %v528 = vunpack.c.l.b16 %v227
      %v529 = vunpack.c.l.b16 %v228
      %v530 = vunpack.c.l.b16 %v229
      %v531 = vunpack.c.l.b16 %v230
      %v532 = vpack.c.b16 %v525, %v524
      %v533 = vpack.c.b16 %v527, %v526
      %v534 = vpack.c.b16 %v529, %v528
      %v535 = vpack.c.b16 %v531, %v530
      %v556 = vunpack.c.l.b16 %v231
      %v557 = vunpack.c.l.b16 %v232
      %v558 = vunpack.c.l.b16 %v233
      %v559 = vunpack.c.l.b16 %v234
      %v560 = vunpack.c.l.b16 %v235
      %v561 = vunpack.c.l.b16 %v236
      %v562 = vunpack.c.l.b16 %v237
      %v563 = vunpack.c.l.b16 %v238
      %v564 = vunpack.c.l.b16 %v239
      %v565 = vunpack.c.l.b16 %v240
      %v566 = vunpack.c.l.b16 %v241
      %v567 = vunpack.c.l.b16 %v242
      %v568 = vunpack.c.l.b16 %v243
      %v569 = vunpack.c.l.b16 %v244
      %v570 = vunpack.c.l.b16 %v245
      %v571 = vunpack.c.l.b16 %v246
      %v572 = vpack.c.b16 %v557, %v556
      %v573 = vpack.c.b16 %v559, %v558
      %v574 = vpack.c.b16 %v561, %v560
      %v575 = vpack.c.b16 %v563, %v562
      %v576 = vpack.c.b16 %v565, %v564
      %v577 = vpack.c.b16 %v567, %v566
      %v578 = vpack.c.b16 %v569, %v568
      %v579 = vpack.c.b16 %v571, %v570
      %588 = vmatprep.subr.bf16.mxu0 0
      %589 = vmatpush1.bf16.msra.mxu0 %v579
      %590 = vmatprep.subr.bf16.mxu0 0
      %591 = vmatpush1.bf16.msra.mxu0 %v578
      %592 = vmatprep.subr.bf16.mxu0 0
      %593 = vmatpush1.bf16.msra.mxu0 %v577
      %594 = vmatprep.subr.bf16.mxu0 0
      %595 = vmatpush1.bf16.msra.mxu0 %v576
      %596 = vmatprep.subr.bf16.mxu0 0
      %597 = vmatpush1.bf16.msra.mxu0 %v575
      %598 = vmatprep.subr.bf16.mxu0 0
      %599 = vmatpush1.bf16.msra.mxu0 %v574
      %600 = vmatprep.subr.bf16.mxu0 0
      %601 = vmatpush1.bf16.msra.mxu0 %v573
      %602 = vmatprep.subr.bf16.mxu0 0
      %603 = vmatpush1.bf16.msra.mxu0 %v572
      %604 = vmatprep.subr.bf16.mxu0 0
      %605 = vmatpush2.bf16.msra.mxu0 0
      %606 = vmatprep.subr.bf16.mxu0 0
      %607 = vmatpush2.bf16.msra.mxu0 0
      %608 = vmatprep.subr.bf16.mxu0 0
      %609 = vmatpush2.bf16.msra.mxu0 0
      %610 = vmatprep.subr.bf16.mxu0 0
      %611 = vmatpush2.bf16.msra.mxu0 0
      %612 = vmatprep.subr.bf16.mxu0 0
      %613 = vmatpush2.bf16.msra.mxu0 0
      %614 = vmatprep.subr.bf16.mxu0 0
      %615 = vmatpush2.bf16.msra.mxu0 0
      %616 = vmatprep.subr.bf16.mxu0 0
      %617 = vmatpush2.bf16.msra.mxu0 0
      %618 = vmatprep.subr.bf16.mxu0 0
      %619 = vmatpush2.bf16.msra.mxu0 0
      %620 = vmatprep.mubr.bf16.mxu0 0
      %621 = vmatmul.mubr.bf16.gmra.mxu0 %v532
      %v622 = vpop.f32.mrf.mxu0
      %v623 = vadd.f32 %v486, %v622
      %v624 = vpop.f32.mrf.mxu0
      %v625 = vpop.f32.mrf.mxu0
      %v626 = vadd.f32 %v489, %v625
      %v627 = vpop.f32.mrf.mxu0
      %628 = vmatprep.mubr.bf16.mxu0 0
      %629 = vmatmul.mubr.bf16.gmra.mxu0 %v533
      %v630 = vpop.f32.mrf.mxu0
      %v631 = vadd.f32 %v494, %v630
      %v632 = vpop.f32.mrf.mxu0
      %v633 = vpop.f32.mrf.mxu0
      %v634 = vadd.f32 %v497, %v633
      %v635 = vpop.f32.mrf.mxu0
      %636 = vmatprep.mubr.bf16.mxu0 0
      %637 = vmatmul.mubr.bf16.gmra.mxu0 %v534
      %v638 = vpop.f32.mrf.mxu0
      %v639 = vadd.f32 %v502, %v638
      %v640 = vpop.f32.mrf.mxu0
      %v641 = vpop.f32.mrf.mxu0
      %v642 = vadd.f32 %v505, %v641
      %v643 = vpop.f32.mrf.mxu0
      %644 = vmatprep.mubr.bf16.mxu0 0
      %645 = vmatmul.mubr.bf16.gmra.mxu0 %v535
      %v646 = vpop.f32.mrf.mxu0
      %v647 = vadd.f32 %v510, %v646
      %v648 = vpop.f32.mrf.mxu0
      %v649 = vpop.f32.mrf.mxu0
      %v650 = vadd.f32 %v513, %v649
      %v651 = vpop.f32.mrf.mxu0
      %652 = vdwg.mxu0
      %v653 = vld [vmem:[%s206] sm:$0xe]
      %v654 = vld [vmem:[%s206 + $0x8] sm:$0xe]
      %v655 = vld [vmem:[%s206 + $0x10] sm:$0xe]
      %v656 = vld [vmem:[%s206 + $0x18] sm:$0xe]
      %v657 = vld [vmem:[%s206 + $0x20] sm:$0xe]
      %v658 = vld [vmem:[%s206 + $0x28] sm:$0xe]
      %v659 = vld [vmem:[%s206 + $0x30] sm:$0xe]
      %v660 = vld [vmem:[%s206 + $0x38] sm:$0xe]
      %vm677 = vcmask 1042432
      %vm678 = vcmask 1046532
      %vm679 = vmor %vm677, %vm678
      %v680 = vrot.slane %v653, 5
      %v681 = vrot.slane %v680, 4
      %v682 = vrot.slane %v247, 5
      %v683 = vsel %vm679, %v681, %v682
      %v684 = vrot.slane %v654, 5
      %v685 = vrot.slane %v684, 4
      %v686 = vrot.slane %v248, 5
      %v687 = vsel %vm679, %v685, %v686
      %v688 = vrot.slane %v655, 5
      %v689 = vrot.slane %v688, 4
      %v690 = vrot.slane %v249, 5
      %v691 = vsel %vm679, %v689, %v690
      %v692 = vrot.slane %v656, 5
      %v693 = vrot.slane %v692, 4
      %v694 = vrot.slane %v250, 5
      %v695 = vsel %vm679, %v693, %v694
      %v696 = vrot.slane %v657, 5
      %v697 = vrot.slane %v696, 4
      %v698 = vrot.slane %v251, 5
      %v699 = vsel %vm679, %v697, %v698
      %v700 = vrot.slane %v658, 5
      %v701 = vrot.slane %v700, 4
      %v702 = vrot.slane %v252, 5
      %v703 = vsel %vm679, %v701, %v702
      %v704 = vrot.slane %v659, 5
      %v705 = vrot.slane %v704, 4
      %v706 = vrot.slane %v253, 5
      %v707 = vsel %vm679, %v705, %v706
      %v708 = vrot.slane %v660, 5
      %v709 = vrot.slane %v708, 4
      %v710 = vrot.slane %v254, 5
      %v711 = vsel %vm679, %v709, %v710
      %s712 = scalar_lea.vmem %s210, 128
      %v713 = vld [vmem:[%s712] sm:$0xf]
      %v714 = vld [vmem:[%s712 + $0x4] sm:$0xf]
      %v715 = vld [vmem:[%s712 + $0x8] sm:$0xf]
      %v716 = vld [vmem:[%s712 + $0xc] sm:$0xf]
      %v717 = vld [vmem:[%s712 + $0x10] sm:$0xf]
      %v718 = vld [vmem:[%s712 + $0x14] sm:$0xf]
      %v719 = vld [vmem:[%s712 + $0x18] sm:$0xf]
      %v720 = vld [vmem:[%s712 + $0x1c] sm:$0xf]
      %v721 = vld [vmem:[%s712 + $0x20] sm:$0xf]
      %v722 = vld [vmem:[%s712 + $0x24] sm:$0xf]
      %v723 = vld [vmem:[%s712 + $0x28] sm:$0xf]
      %v724 = vld [vmem:[%s712 + $0x2c] sm:$0xf]
      %v725 = vld [vmem:[%s712 + $0x30] sm:$0xf]
      %v726 = vld [vmem:[%s712 + $0x34] sm:$0xf]
      %v727 = vld [vmem:[%s712 + $0x38] sm:$0xf]
      %v728 = vld [vmem:[%s712 + $0x3c] sm:$0xf]
      %v729 = vunpack.c.l.b16 %v683
      %v730 = vunpack.c.l.b16 %v687
      %v731 = vunpack.c.l.b16 %v691
      %v732 = vunpack.c.l.b16 %v695
      %v733 = vunpack.c.l.b16 %v699
      %v734 = vunpack.c.l.b16 %v703
      %v735 = vunpack.c.l.b16 %v707
      %v736 = vunpack.c.l.b16 %v711
      %v737 = vpack.c.b16 %v730, %v729
      %v738 = vpack.c.b16 %v732, %v731
      %v739 = vpack.c.b16 %v734, %v733
      %v740 = vpack.c.b16 %v736, %v735
      %v761 = vunpack.c.l.b16 %v713
      %v762 = vunpack.c.l.b16 %v714
      %v763 = vunpack.c.l.b16 %v715
      %v764 = vunpack.c.l.b16 %v716
      %v765 = vunpack.c.l.b16 %v717
      %v766 = vunpack.c.l.b16 %v718
      %v767 = vunpack.c.l.b16 %v719
      %v768 = vunpack.c.l.b16 %v720
      %v769 = vunpack.c.l.b16 %v721
      %v770 = vunpack.c.l.b16 %v722
      %v771 = vunpack.c.l.b16 %v723
      %v772 = vunpack.c.l.b16 %v724
      %v773 = vunpack.c.l.b16 %v725
      %v774 = vunpack.c.l.b16 %v726
      %v775 = vunpack.c.l.b16 %v727
      %v776 = vunpack.c.l.b16 %v728
      %v777 = vpack.c.b16 %v762, %v761
      %v778 = vpack.c.b16 %v764, %v763
      %v779 = vpack.c.b16 %v766, %v765
      %v780 = vpack.c.b16 %v768, %v767
      %v781 = vpack.c.b16 %v770, %v769
      %v782 = vpack.c.b16 %v772, %v771
      %v783 = vpack.c.b16 %v774, %v773
      %v784 = vpack.c.b16 %v776, %v775
      %793 = vmatprep.subr.bf16.mxu0 0
      %794 = vmatpush1.bf16.msra.mxu0 %v784
      %795 = vmatprep.subr.bf16.mxu0 0
      %796 = vmatpush1.bf16.msra.mxu0 %v783
      %797 = vmatprep.subr.bf16.mxu0 0
      %798 = vmatpush1.bf16.msra.mxu0 %v782
      %799 = vmatprep.subr.bf16.mxu0 0
      %800 = vmatpush1.bf16.msra.mxu0 %v781
      %801 = vmatprep.subr.bf16.mxu0 0
      %802 = vmatpush1.bf16.msra.mxu0 %v780
      %803 = vmatprep.subr.bf16.mxu0 0
      %804 = vmatpush1.bf16.msra.mxu0 %v779
      %805 = vmatprep.subr.bf16.mxu0 0
      %806 = vmatpush1.bf16.msra.mxu0 %v778
      %807 = vmatprep.subr.bf16.mxu0 0
      %808 = vmatpush1.bf16.msra.mxu0 %v777
      %809 = vmatprep.subr.bf16.mxu0 0
      %810 = vmatpush2.bf16.msra.mxu0 0
      %811 = vmatprep.subr.bf16.mxu0 0
      %812 = vmatpush2.bf16.msra.mxu0 0
      %813 = vmatprep.subr.bf16.mxu0 0
      %814 = vmatpush2.bf16.msra.mxu0 0
      %815 = vmatprep.subr.bf16.mxu0 0
      %816 = vmatpush2.bf16.msra.mxu0 0
      %817 = vmatprep.subr.bf16.mxu0 0
      %818 = vmatpush2.bf16.msra.mxu0 0
      %819 = vmatprep.subr.bf16.mxu0 0
      %820 = vmatpush2.bf16.msra.mxu0 0
      %821 = vmatprep.subr.bf16.mxu0 0
      %822 = vmatpush2.bf16.msra.mxu0 0
      %823 = vmatprep.subr.bf16.mxu0 0
      %824 = vmatpush2.bf16.msra.mxu0 0
      %825 = vmatprep.mubr.bf16.mxu0 0
      %826 = vmatmul.mubr.bf16.gmra.mxu0 %v737
      %v827 = vpop.f32.mrf.mxu0
      %v828 = vadd.f32 0.0, %v827
      %v829 = vpop.f32.mrf.mxu0
      %v830 = vpop.f32.mrf.mxu0
      %v831 = vadd.f32 0.0, %v830
      %v832 = vpop.f32.mrf.mxu0
      %833 = vmatprep.mubr.bf16.mxu0 0
      %834 = vmatmul.mubr.bf16.gmra.mxu0 %v738
      %v835 = vpop.f32.mrf.mxu0
      %v836 = vadd.f32 0.0, %v835
      %v837 = vpop.f32.mrf.mxu0
      %v838 = vpop.f32.mrf.mxu0
      %v839 = vadd.f32 0.0, %v838
      %v840 = vpop.f32.mrf.mxu0
      %841 = vmatprep.mubr.bf16.mxu0 0
      %842 = vmatmul.mubr.bf16.gmra.mxu0 %v739
      %v843 = vpop.f32.mrf.mxu0
      %v844 = vadd.f32 0.0, %v843
      %v845 = vpop.f32.mrf.mxu0
      %v846 = vpop.f32.mrf.mxu0
      %v847 = vadd.f32 0.0, %v846
      %v848 = vpop.f32.mrf.mxu0
      %849 = vmatprep.mubr.bf16.mxu0 0
      %850 = vmatmul.mubr.bf16.gmra.mxu0 %v740
      %v851 = vpop.f32.mrf.mxu0
      %v852 = vadd.f32 0.0, %v851
      %v853 = vpop.f32.mrf.mxu0
      %v854 = vpop.f32.mrf.mxu0
      %v855 = vadd.f32 0.0, %v854
      %v856 = vpop.f32.mrf.mxu0
      %857 = vdwg.mxu0
      %v858 = vadd.f32 %v623, %v828
      %v859 = vadd.f32 %v626, %v831
      %v860 = vadd.f32 %v631, %v836
      %v861 = vadd.f32 %v634, %v839
      %v862 = vadd.f32 %v639, %v844
      %v863 = vadd.f32 %v642, %v847
      %v864 = vadd.f32 %v647, %v852
      %v865 = vadd.f32 %v650, %v855
      %s866 = scalar_lea.vmem %s206, 8
      %v867 = vld [vmem:[%s866] sm:$0xf]
      %v868 = vld [vmem:[%s866 + $0x8] sm:$0xf]
      %v869 = vld [vmem:[%s866 + $0x10] sm:$0xf]
      %v870 = vld [vmem:[%s866 + $0x18] sm:$0xf]
      %v871 = vld [vmem:[%s866 + $0x20] sm:$0xf]
      %v872 = vld [vmem:[%s866 + $0x28] sm:$0xf]
      %v873 = vld [vmem:[%s866 + $0x30] sm:$0xf]
      %v874 = vld [vmem:[%s866 + $0x38] sm:$0xf]
      %s875 = scalar_lea.vmem %s210, 192
      %v876 = vld [vmem:[%s875] sm:$0xf]
      %v877 = vld [vmem:[%s875 + $0x4] sm:$0xf]
      %v878 = vld [vmem:[%s875 + $0x8] sm:$0xf]
      %v879 = vld [vmem:[%s875 + $0xc] sm:$0xf]
      %v880 = vld [vmem:[%s875 + $0x10] sm:$0xf]
      %v881 = vld [vmem:[%s875 + $0x14] sm:$0xf]
      %v882 = vld [vmem:[%s875 + $0x18] sm:$0xf]
      %v883 = vld [vmem:[%s875 + $0x1c] sm:$0xf]
      %v884 = vld [vmem:[%s875 + $0x20] sm:$0xf]
      %v885 = vld [vmem:[%s875 + $0x24] sm:$0xf]
      %v886 = vld [vmem:[%s875 + $0x28] sm:$0xf]
      %v887 = vld [vmem:[%s875 + $0x2c] sm:$0xf]
      %v888 = vld [vmem:[%s875 + $0x30] sm:$0xf]
      %v889 = vld [vmem:[%s875 + $0x34] sm:$0xf]
      %v890 = vld [vmem:[%s875 + $0x38] sm:$0xf]
      %v891 = vld [vmem:[%s875 + $0x3c] sm:$0xf]
      %v900 = vunpack.c.l.b16 %v867
      %v901 = vunpack.c.l.b16 %v868
      %v902 = vunpack.c.l.b16 %v869
      %v903 = vunpack.c.l.b16 %v870
      %v904 = vunpack.c.l.b16 %v871
      %v905 = vunpack.c.l.b16 %v872
      %v906 = vunpack.c.l.b16 %v873
      %v907 = vunpack.c.l.b16 %v874
      %v908 = vpack.c.b16 %v901, %v900
      %v909 = vpack.c.b16 %v903, %v902
      %v910 = vpack.c.b16 %v905, %v904
      %v911 = vpack.c.b16 %v907, %v906
      %v932 = vunpack.c.l.b16 %v876
      %v933 = vunpack.c.l.b16 %v877
      %v934 = vunpack.c.l.b16 %v878
      %v935 = vunpack.c.l.b16 %v879
      %v936 = vunpack.c.l.b16 %v880
      %v937 = vunpack.c.l.b16 %v881
      %v938 = vunpack.c.l.b16 %v882
      %v939 = vunpack.c.l.b16 %v883
      %v940 = vunpack.c.l.b16 %v884
      %v941 = vunpack.c.l.b16 %v885
      %v942 = vunpack.c.l.b16 %v886
      %v943 = vunpack.c.l.b16 %v887
      %v944 = vunpack.c.l.b16 %v888
      %v945 = vunpack.c.l.b16 %v889
      %v946 = vunpack.c.l.b16 %v890
      %v947 = vunpack.c.l.b16 %v891
      %v948 = vpack.c.b16 %v933, %v932
      %v949 = vpack.c.b16 %v935, %v934
      %v950 = vpack.c.b16 %v937, %v936
      %v951 = vpack.c.b16 %v939, %v938
      %v952 = vpack.c.b16 %v941, %v940
      %v953 = vpack.c.b16 %v943, %v942
      %v954 = vpack.c.b16 %v945, %v944
      %v955 = vpack.c.b16 %v947, %v946
      %964 = vmatprep.subr.bf16.mxu0 0
      %965 = vmatpush1.bf16.msra.mxu0 %v955
      %966 = vmatprep.subr.bf16.mxu0 0
      %967 = vmatpush1.bf16.msra.mxu0 %v954
      %968 = vmatprep.subr.bf16.mxu0 0
      %969 = vmatpush1.bf16.msra.mxu0 %v953
      %970 = vmatprep.subr.bf16.mxu0 0
      %971 = vmatpush1.bf16.msra.mxu0 %v952
      %972 = vmatprep.subr.bf16.mxu0 0
      %973 = vmatpush1.bf16.msra.mxu0 %v951
      %974 = vmatprep.subr.bf16.mxu0 0
      %975 = vmatpush1.bf16.msra.mxu0 %v950
      %976 = vmatprep.subr.bf16.mxu0 0
      %977 = vmatpush1.bf16.msra.mxu0 %v949
      %978 = vmatprep.subr.bf16.mxu0 0
      %979 = vmatpush1.bf16.msra.mxu0 %v948
      %980 = vmatprep.subr.bf16.mxu0 0
      %981 = vmatpush2.bf16.msra.mxu0 0
      %982 = vmatprep.subr.bf16.mxu0 0
      %983 = vmatpush2.bf16.msra.mxu0 0
      %984 = vmatprep.subr.bf16.mxu0 0
      %985 = vmatpush2.bf16.msra.mxu0 0
      %986 = vmatprep.subr.bf16.mxu0 0
      %987 = vmatpush2.bf16.msra.mxu0 0
      %988 = vmatprep.subr.bf16.mxu0 0
      %989 = vmatpush2.bf16.msra.mxu0 0
      %990 = vmatprep.subr.bf16.mxu0 0
      %991 = vmatpush2.bf16.msra.mxu0 0
      %992 = vmatprep.subr.bf16.mxu0 0
      %993 = vmatpush2.bf16.msra.mxu0 0
      %994 = vmatprep.subr.bf16.mxu0 0
      %995 = vmatpush2.bf16.msra.mxu0 0
      %996 = vmatprep.mubr.bf16.mxu0 0
      %997 = vmatmul.mubr.bf16.gmra.mxu0 %v908
      %v998 = vpop.f32.mrf.mxu0
      %v999 = vadd.f32 0.0, %v998
      %v1000 = vpop.f32.mrf.mxu0
      %v1001 = vpop.f32.mrf.mxu0
      %v1002 = vadd.f32 0.0, %v1001
      %v1003 = vpop.f32.mrf.mxu0
      %1004 = vmatprep.mubr.bf16.mxu0 0
      %1005 = vmatmul.mubr.bf16.gmra.mxu0 %v909
      %v1006 = vpop.f32.mrf.mxu0
      %v1007 = vadd.f32 0.0, %v1006
      %v1008 = vpop.f32.mrf.mxu0
      %v1009 = vpop.f32.mrf.mxu0
      %v1010 = vadd.f32 0.0, %v1009
      %v1011 = vpop.f32.mrf.mxu0
      %1012 = vmatprep.mubr.bf16.mxu0 0
      %1013 = vmatmul.mubr.bf16.gmra.mxu0 %v910
      %v1014 = vpop.f32.mrf.mxu0
      %v1015 = vadd.f32 0.0, %v1014
      %v1016 = vpop.f32.mrf.mxu0
      %v1017 = vpop.f32.mrf.mxu0
      %v1018 = vadd.f32 0.0, %v1017
      %v1019 = vpop.f32.mrf.mxu0
      %1020 = vmatprep.mubr.bf16.mxu0 0
      %1021 = vmatmul.mubr.bf16.gmra.mxu0 %v911
      %v1022 = vpop.f32.mrf.mxu0
      %v1023 = vadd.f32 0.0, %v1022
      %v1024 = vpop.f32.mrf.mxu0
      %v1025 = vpop.f32.mrf.mxu0
      %v1026 = vadd.f32 0.0, %v1025
      %v1027 = vpop.f32.mrf.mxu0
      %1028 = vdwg.mxu0
      %v1029 = vadd.f32 %v858, %v999
      %v1030 = vadd.f32 %v859, %v1002
      %v1031 = vadd.f32 %v860, %v1007
      %v1032 = vadd.f32 %v861, %v1010
      %v1033 = vadd.f32 %v862, %v1015
      %v1034 = vadd.f32 %v863, %v1018
      %v1035 = vadd.f32 %v864, %v1023
      %v1036 = vadd.f32 %v865, %v1026
      %v1037 = vld [vmem:[%s866] sm:$0xf]
      %v1038 = vld [vmem:[%s866 + $0x4] sm:$0x1]
      %v1039 = vld [vmem:[%s866 + $0x8] sm:$0xf]
      %v1040 = vld [vmem:[%s866 + $0xc] sm:$0x1]
      %v1041 = vld [vmem:[%s866 + $0x10] sm:$0xf]
      %v1042 = vld [vmem:[%s866 + $0x14] sm:$0x1]
      %v1043 = vld [vmem:[%s866 + $0x18] sm:$0xf]
      %v1044 = vld [vmem:[%s866 + $0x1c] sm:$0x1]
      %v1045 = vld [vmem:[%s866 + $0x20] sm:$0xf]
      %v1046 = vld [vmem:[%s866 + $0x24] sm:$0x1]
      %v1047 = vld [vmem:[%s866 + $0x28] sm:$0xf]
      %v1048 = vld [vmem:[%s866 + $0x2c] sm:$0x1]
      %v1049 = vld [vmem:[%s866 + $0x30] sm:$0xf]
      %v1050 = vld [vmem:[%s866 + $0x34] sm:$0x1]
      %v1051 = vld [vmem:[%s866 + $0x38] sm:$0xf]
      %v1052 = vld [vmem:[%s866 + $0x3c] sm:$0x1]
      %v1054 = vshrl.u32 %v1037, 16
      %v1056 = vrot.slane %v1054, 4
      %v1057 = vshll.u32 %v1037, 16
      %v1059 = vrot.slane %v1057, 5
      %v1060 = vor.u32 %v1056, %v1059
      %v1061 = vrot.slane %v1060, 4
      %v1063 = vshll.u32 %v1038, 16
      %v1065 = vrot.slane %v1063, 5
      %v1066 = vsel %vm257, %v1061, %v1065
      %v1068 = vshrl.u32 %v1039, 16
      %v1070 = vrot.slane %v1068, 4
      %v1071 = vshll.u32 %v1039, 16
      %v1073 = vrot.slane %v1071, 5
      %v1074 = vor.u32 %v1070, %v1073
      %v1075 = vrot.slane %v1074, 4
      %v1077 = vshll.u32 %v1040, 16
      %v1079 = vrot.slane %v1077, 5
      %v1080 = vsel %vm257, %v1075, %v1079
      %v1082 = vshrl.u32 %v1041, 16
      %v1084 = vrot.slane %v1082, 4
      %v1085 = vshll.u32 %v1041, 16
      %v1087 = vrot.slane %v1085, 5
      %v1088 = vor.u32 %v1084, %v1087
      %v1089 = vrot.slane %v1088, 4
      %v1091 = vshll.u32 %v1042, 16
      %v1093 = vrot.slane %v1091, 5
      %v1094 = vsel %vm257, %v1089, %v1093
      %v1096 = vshrl.u32 %v1043, 16
      %v1098 = vrot.slane %v1096, 4
      %v1099 = vshll.u32 %v1043, 16
      %v1101 = vrot.slane %v1099, 5
      %v1102 = vor.u32 %v1098, %v1101
      %v1103 = vrot.slane %v1102, 4
      %v1105 = vshll.u32 %v1044, 16
      %v1107 = vrot.slane %v1105, 5
      %v1108 = vsel %vm257, %v1103, %v1107
      %v1110 = vshrl.u32 %v1045, 16
      %v1112 = vrot.slane %v1110, 4
      %v1113 = vshll.u32 %v1045, 16
      %v1115 = vrot.slane %v1113, 5
      %v1116 = vor.u32 %v1112, %v1115
      %v1117 = vrot.slane %v1116, 4
      %v1119 = vshll.u32 %v1046, 16
      %v1121 = vrot.slane %v1119, 5
      %v1122 = vsel %vm257, %v1117, %v1121
      %v1124 = vshrl.u32 %v1047, 16
      %v1126 = vrot.slane %v1124, 4
      %v1127 = vshll.u32 %v1047, 16
      %v1129 = vrot.slane %v1127, 5
      %v1130 = vor.u32 %v1126, %v1129
      %v1131 = vrot.slane %v1130, 4
      %v1133 = vshll.u32 %v1048, 16
      %v1135 = vrot.slane %v1133, 5
      %v1136 = vsel %vm257, %v1131, %v1135
      %v1138 = vshrl.u32 %v1049, 16
      %v1140 = vrot.slane %v1138, 4
      %v1141 = vshll.u32 %v1049, 16
      %v1143 = vrot.slane %v1141, 5
      %v1144 = vor.u32 %v1140, %v1143
      %v1145 = vrot.slane %v1144, 4
      %v1147 = vshll.u32 %v1050, 16
      %v1149 = vrot.slane %v1147, 5
      %v1150 = vsel %vm257, %v1145, %v1149
      %v1152 = vshrl.u32 %v1051, 16
      %v1154 = vrot.slane %v1152, 4
      %v1155 = vshll.u32 %v1051, 16
      %v1157 = vrot.slane %v1155, 5
      %v1158 = vor.u32 %v1154, %v1157
      %v1159 = vrot.slane %v1158, 4
      %v1161 = vshll.u32 %v1052, 16
      %v1163 = vrot.slane %v1161, 5
      %v1164 = vsel %vm257, %v1159, %v1163
      %s1165 = scalar_lea.vmem %s210, 256
      %v1166 = vld [vmem:[%s1165] sm:$0xf]
      %v1167 = vld [vmem:[%s1165 + $0x4] sm:$0xf]
      %v1168 = vld [vmem:[%s1165 + $0x8] sm:$0xf]
      %v1169 = vld [vmem:[%s1165 + $0xc] sm:$0xf]
      %v1170 = vld [vmem:[%s1165 + $0x10] sm:$0xf]
      %v1171 = vld [vmem:[%s1165 + $0x14] sm:$0xf]
      %v1172 = vld [vmem:[%s1165 + $0x18] sm:$0xf]
      %v1173 = vld [vmem:[%s1165 + $0x1c] sm:$0xf]
      %v1174 = vld [vmem:[%s1165 + $0x20] sm:$0xf]
      %v1175 = vld [vmem:[%s1165 + $0x24] sm:$0xf]
      %v1176 = vld [vmem:[%s1165 + $0x28] sm:$0xf]
      %v1177 = vld [vmem:[%s1165 + $0x2c] sm:$0xf]
      %v1178 = vld [vmem:[%s1165 + $0x30] sm:$0xf]
      %v1179 = vld [vmem:[%s1165 + $0x34] sm:$0xf]
      %v1180 = vld [vmem:[%s1165 + $0x38] sm:$0xf]
      %v1181 = vld [vmem:[%s1165 + $0x3c] sm:$0xf]
      %v1182 = vunpack.c.l.b16 %v1066
      %v1183 = vunpack.c.l.b16 %v1080
      %v1184 = vunpack.c.l.b16 %v1094
      %v1185 = vunpack.c.l.b16 %v1108
      %v1186 = vunpack.c.l.b16 %v1122
      %v1187 = vunpack.c.l.b16 %v1136
      %v1188 = vunpack.c.l.b16 %v1150
      %v1189 = vunpack.c.l.b16 %v1164
      %v1190 = vpack.c.b16 %v1183, %v1182
      %v1191 = vpack.c.b16 %v1185, %v1184
      %v1192 = vpack.c.b16 %v1187, %v1186
      %v1193 = vpack.c.b16 %v1189, %v1188
      %v1214 = vunpack.c.l.b16 %v1166
      %v1215 = vunpack.c.l.b16 %v1167
      %v1216 = vunpack.c.l.b16 %v1168
      %v1217 = vunpack.c.l.b16 %v1169
      %v1218 = vunpack.c.l.b16 %v1170
      %v1219 = vunpack.c.l.b16 %v1171
      %v1220 = vunpack.c.l.b16 %v1172
      %v1221 = vunpack.c.l.b16 %v1173
      %v1222 = vunpack.c.l.b16 %v1174
      %v1223 = vunpack.c.l.b16 %v1175
      %v1224 = vunpack.c.l.b16 %v1176
      %v1225 = vunpack.c.l.b16 %v1177
      %v1226 = vunpack.c.l.b16 %v1178
      %v1227 = vunpack.c.l.b16 %v1179
      %v1228 = vunpack.c.l.b16 %v1180
      %v1229 = vunpack.c.l.b16 %v1181
      %v1230 = vpack.c.b16 %v1215, %v1214
      %v1231 = vpack.c.b16 %v1217, %v1216
      %v1232 = vpack.c.b16 %v1219, %v1218
      %v1233 = vpack.c.b16 %v1221, %v1220
      %v1234 = vpack.c.b16 %v1223, %v1222
      %v1235 = vpack.c.b16 %v1225, %v1224
      %v1236 = vpack.c.b16 %v1227, %v1226
      %v1237 = vpack.c.b16 %v1229, %v1228
      %1246 = vmatprep.subr.bf16.mxu0 0
      %1247 = vmatpush1.bf16.msra.mxu0 %v1237
      %1248 = vmatprep.subr.bf16.mxu0 0
      %1249 = vmatpush1.bf16.msra.mxu0 %v1236
      %1250 = vmatprep.subr.bf16.mxu0 0
      %1251 = vmatpush1.bf16.msra.mxu0 %v1235
      %1252 = vmatprep.subr.bf16.mxu0 0
      %1253 = vmatpush1.bf16.msra.mxu0 %v1234
      %1254 = vmatprep.subr.bf16.mxu0 0
      %1255 = vmatpush1.bf16.msra.mxu0 %v1233
      %1256 = vmatprep.subr.bf16.mxu0 0
      %1257 = vmatpush1.bf16.msra.mxu0 %v1232
      %1258 = vmatprep.subr.bf16.mxu0 0
      %1259 = vmatpush1.bf16.msra.mxu0 %v1231
      %1260 = vmatprep.subr.bf16.mxu0 0
      %1261 = vmatpush1.bf16.msra.mxu0 %v1230
      %1262 = vmatprep.subr.bf16.mxu0 0
      %1263 = vmatpush2.bf16.msra.mxu0 0
      %1264 = vmatprep.subr.bf16.mxu0 0
      %1265 = vmatpush2.bf16.msra.mxu0 0
      %1266 = vmatprep.subr.bf16.mxu0 0
      %1267 = vmatpush2.bf16.msra.mxu0 0
      %1268 = vmatprep.subr.bf16.mxu0 0
      %1269 = vmatpush2.bf16.msra.mxu0 0
      %1270 = vmatprep.subr.bf16.mxu0 0
      %1271 = vmatpush2.bf16.msra.mxu0 0
      %1272 = vmatprep.subr.bf16.mxu0 0
      %1273 = vmatpush2.bf16.msra.mxu0 0
      %1274 = vmatprep.subr.bf16.mxu0 0
      %1275 = vmatpush2.bf16.msra.mxu0 0
      %1276 = vmatprep.subr.bf16.mxu0 0
      %1277 = vmatpush2.bf16.msra.mxu0 0
      %1278 = vmatprep.mubr.bf16.mxu0 0
      %1279 = vmatmul.mubr.bf16.gmra.mxu0 %v1190
      %v1280 = vpop.f32.mrf.mxu0
      %v1281 = vadd.f32 0.0, %v1280
      %v1282 = vpop.f32.mrf.mxu0
      %v1283 = vpop.f32.mrf.mxu0
      %v1284 = vadd.f32 0.0, %v1283
      %v1285 = vpop.f32.mrf.mxu0
      %1286 = vmatprep.mubr.bf16.mxu0 0
      %1287 = vmatmul.mubr.bf16.gmra.mxu0 %v1191
      %v1288 = vpop.f32.mrf.mxu0
      %v1289 = vadd.f32 0.0, %v1288
      %v1290 = vpop.f32.mrf.mxu0
      %v1291 = vpop.f32.mrf.mxu0
      %v1292 = vadd.f32 0.0, %v1291
      %v1293 = vpop.f32.mrf.mxu0
      %1294 = vmatprep.mubr.bf16.mxu0 0
      %1295 = vmatmul.mubr.bf16.gmra.mxu0 %v1192
      %v1296 = vpop.f32.mrf.mxu0
      %v1297 = vadd.f32 0.0, %v1296
      %v1298 = vpop.f32.mrf.mxu0
      %v1299 = vpop.f32.mrf.mxu0
      %v1300 = vadd.f32 0.0, %v1299
      %v1301 = vpop.f32.mrf.mxu0
      %1302 = vmatprep.mubr.bf16.mxu0 0
      %1303 = vmatmul.mubr.bf16.gmra.mxu0 %v1193
      %v1304 = vpop.f32.mrf.mxu0
      %v1305 = vadd.f32 0.0, %v1304
      %v1306 = vpop.f32.mrf.mxu0
      %v1307 = vpop.f32.mrf.mxu0
      %v1308 = vadd.f32 0.0, %v1307
      %v1309 = vpop.f32.mrf.mxu0
      %1310 = vdwg.mxu0
      %v1311 = vadd.f32 %v1029, %v1281
      %v1312 = vadd.f32 %v1030, %v1284
      %v1313 = vadd.f32 %v1031, %v1289
      %v1314 = vadd.f32 %v1032, %v1292
      %v1315 = vadd.f32 %v1033, %v1297
      %v1316 = vadd.f32 %v1034, %v1300
      %v1317 = vadd.f32 %v1035, %v1305
      %v1318 = vadd.f32 %v1036, %v1308
      %v1319 = vld [vmem:[%s866] sm:$0xe]
      %v1320 = vld [vmem:[%s866 + $0x8] sm:$0xe]
      %v1321 = vld [vmem:[%s866 + $0x10] sm:$0xe]
      %v1322 = vld [vmem:[%s866 + $0x18] sm:$0xe]
      %v1323 = vld [vmem:[%s866 + $0x20] sm:$0xe]
      %v1324 = vld [vmem:[%s866 + $0x28] sm:$0xe]
      %v1325 = vld [vmem:[%s866 + $0x30] sm:$0xe]
      %v1326 = vld [vmem:[%s866 + $0x38] sm:$0xe]
      %v1343 = vrot.slane %v1319, 5
      %v1344 = vrot.slane %v1343, 4
      %v1345 = vrot.slane %v1038, 5
      %v1346 = vsel %vm679, %v1344, %v1345
      %v1347 = vrot.slane %v1320, 5
      %v1348 = vrot.slane %v1347, 4
      %v1349 = vrot.slane %v1040, 5
      %v1350 = vsel %vm679, %v1348, %v1349
      %v1351 = vrot.slane %v1321, 5
      %v1352 = vrot.slane %v1351, 4
      %v1353 = vrot.slane %v1042, 5
      %v1354 = vsel %vm679, %v1352, %v1353
      %v1355 = vrot.slane %v1322, 5
      %v1356 = vrot.slane %v1355, 4
      %v1357 = vrot.slane %v1044, 5
      %v1358 = vsel %vm679, %v1356, %v1357
      %v1359 = vrot.slane %v1323, 5
      %v1360 = vrot.slane %v1359, 4
      %v1361 = vrot.slane %v1046, 5
      %v1362 = vsel %vm679, %v1360, %v1361
      %v1363 = vrot.slane %v1324, 5
      %v1364 = vrot.slane %v1363, 4
      %v1365 = vrot.slane %v1048, 5
      %v1366 = vsel %vm679, %v1364, %v1365
      %v1367 = vrot.slane %v1325, 5
      %v1368 = vrot.slane %v1367, 4
      %v1369 = vrot.slane %v1050, 5
      %v1370 = vsel %vm679, %v1368, %v1369
      %v1371 = vrot.slane %v1326, 5
      %v1372 = vrot.slane %v1371, 4
      %v1373 = vrot.slane %v1052, 5
      %v1374 = vsel %vm679, %v1372, %v1373
      %s1375 = scalar_lea.vmem %s210, 320
      %v1376 = vld [vmem:[%s1375] sm:$0xf]
      %v1377 = vld [vmem:[%s1375 + $0x4] sm:$0xf]
      %v1378 = vld [vmem:[%s1375 + $0x8] sm:$0xf]
      %v1379 = vld [vmem:[%s1375 + $0xc] sm:$0xf]
      %v1380 = vld [vmem:[%s1375 + $0x10] sm:$0xf]
      %v1381 = vld [vmem:[%s1375 + $0x14] sm:$0xf]
      %v1382 = vld [vmem:[%s1375 + $0x18] sm:$0xf]
      %v1383 = vld [vmem:[%s1375 + $0x1c] sm:$0xf]
      %v1384 = vld [vmem:[%s1375 + $0x20] sm:$0xf]
      %v1385 = vld [vmem:[%s1375 + $0x24] sm:$0xf]
      %v1386 = vld [vmem:[%s1375 + $0x28] sm:$0xf]
      %v1387 = vld [vmem:[%s1375 + $0x2c] sm:$0xf]
      %v1388 = vld [vmem:[%s1375 + $0x30] sm:$0xf]
      %v1389 = vld [vmem:[%s1375 + $0x34] sm:$0xf]
      %v1390 = vld [vmem:[%s1375 + $0x38] sm:$0xf]
      %v1391 = vld [vmem:[%s1375 + $0x3c] sm:$0xf]
      %v1392 = vunpack.c.l.b16 %v1346
      %v1393 = vunpack.c.l.b16 %v1350
      %v1394 = vunpack.c.l.b16 %v1354
      %v1395 = vunpack.c.l.b16 %v1358
      %v1396 = vunpack.c.l.b16 %v1362
      %v1397 = vunpack.c.l.b16 %v1366
      %v1398 = vunpack.c.l.b16 %v1370
      %v1399 = vunpack.c.l.b16 %v1374
      %v1400 = vpack.c.b16 %v1393, %v1392
      %v1401 = vpack.c.b16 %v1395, %v1394
      %v1402 = vpack.c.b16 %v1397, %v1396
      %v1403 = vpack.c.b16 %v1399, %v1398
      %v1424 = vunpack.c.l.b16 %v1376
      %v1425 = vunpack.c.l.b16 %v1377
      %v1426 = vunpack.c.l.b16 %v1378
      %v1427 = vunpack.c.l.b16 %v1379
      %v1428 = vunpack.c.l.b16 %v1380
      %v1429 = vunpack.c.l.b16 %v1381
      %v1430 = vunpack.c.l.b16 %v1382
      %v1431 = vunpack.c.l.b16 %v1383
      %v1432 = vunpack.c.l.b16 %v1384
      %v1433 = vunpack.c.l.b16 %v1385
      %v1434 = vunpack.c.l.b16 %v1386
      %v1435 = vunpack.c.l.b16 %v1387
      %v1436 = vunpack.c.l.b16 %v1388
      %v1437 = vunpack.c.l.b16 %v1389
      %v1438 = vunpack.c.l.b16 %v1390
      %v1439 = vunpack.c.l.b16 %v1391
      %v1440 = vpack.c.b16 %v1425, %v1424
      %v1441 = vpack.c.b16 %v1427, %v1426
      %v1442 = vpack.c.b16 %v1429, %v1428
      %v1443 = vpack.c.b16 %v1431, %v1430
      %v1444 = vpack.c.b16 %v1433, %v1432
      %v1445 = vpack.c.b16 %v1435, %v1434
      %v1446 = vpack.c.b16 %v1437, %v1436
      %v1447 = vpack.c.b16 %v1439, %v1438
      %1456 = vmatprep.subr.bf16.mxu0 0
      %1457 = vmatpush1.bf16.msra.mxu0 %v1447
      %1458 = vmatprep.subr.bf16.mxu0 0
      %1459 = vmatpush1.bf16.msra.mxu0 %v1446
      %1460 = vmatprep.subr.bf16.mxu0 0
      %1461 = vmatpush1.bf16.msra.mxu0 %v1445
      %1462 = vmatprep.subr.bf16.mxu0 0
      %1463 = vmatpush1.bf16.msra.mxu0 %v1444
      %1464 = vmatprep.subr.bf16.mxu0 0
      %1465 = vmatpush1.bf16.msra.mxu0 %v1443
      %1466 = vmatprep.subr.bf16.mxu0 0
      %1467 = vmatpush1.bf16.msra.mxu0 %v1442
      %1468 = vmatprep.subr.bf16.mxu0 0
      %1469 = vmatpush1.bf16.msra.mxu0 %v1441
      %1470 = vmatprep.subr.bf16.mxu0 0
      %1471 = vmatpush1.bf16.msra.mxu0 %v1440
      %1472 = vmatprep.subr.bf16.mxu0 0
      %1473 = vmatpush2.bf16.msra.mxu0 0
      %1474 = vmatprep.subr.bf16.mxu0 0
      %1475 = vmatpush2.bf16.msra.mxu0 0
      %1476 = vmatprep.subr.bf16.mxu0 0
      %1477 = vmatpush2.bf16.msra.mxu0 0
      %1478 = vmatprep.subr.bf16.mxu0 0
      %1479 = vmatpush2.bf16.msra.mxu0 0
      %1480 = vmatprep.subr.bf16.mxu0 0
      %1481 = vmatpush2.bf16.msra.mxu0 0
      %1482 = vmatprep.subr.bf16.mxu0 0
      %1483 = vmatpush2.bf16.msra.mxu0 0
      %1484 = vmatprep.subr.bf16.mxu0 0
      %1485 = vmatpush2.bf16.msra.mxu0 0
      %1486 = vmatprep.subr.bf16.mxu0 0
      %1487 = vmatpush2.bf16.msra.mxu0 0
      %1488 = vmatprep.mubr.bf16.mxu0 0
      %1489 = vmatmul.mubr.bf16.gmra.mxu0 %v1400
      %v1490 = vpop.f32.mrf.mxu0
      %v1491 = vadd.f32 0.0, %v1490
      %v1492 = vpop.f32.mrf.mxu0
      %v1493 = vpop.f32.mrf.mxu0
      %v1494 = vadd.f32 0.0, %v1493
      %v1495 = vpop.f32.mrf.mxu0
      %1496 = vmatprep.mubr.bf16.mxu0 0
      %1497 = vmatmul.mubr.bf16.gmra.mxu0 %v1401
      %v1498 = vpop.f32.mrf.mxu0
      %v1499 = vadd.f32 0.0, %v1498
      %v1500 = vpop.f32.mrf.mxu0
      %v1501 = vpop.f32.mrf.mxu0
      %v1502 = vadd.f32 0.0, %v1501
      %v1503 = vpop.f32.mrf.mxu0
      %1504 = vmatprep.mubr.bf16.mxu0 0
      %1505 = vmatmul.mubr.bf16.gmra.mxu0 %v1402
      %v1506 = vpop.f32.mrf.mxu0
      %v1507 = vadd.f32 0.0, %v1506
      %v1508 = vpop.f32.mrf.mxu0
      %v1509 = vpop.f32.mrf.mxu0
      %v1510 = vadd.f32 0.0, %v1509
      %v1511 = vpop.f32.mrf.mxu0
      %1512 = vmatprep.mubr.bf16.mxu0 0
      %1513 = vmatmul.mubr.bf16.gmra.mxu0 %v1403
      %v1514 = vpop.f32.mrf.mxu0
      %v1515 = vadd.f32 0.0, %v1514
      %v1516 = vpop.f32.mrf.mxu0
      %v1517 = vpop.f32.mrf.mxu0
      %v1518 = vadd.f32 0.0, %v1517
      %v1519 = vpop.f32.mrf.mxu0
      %1520 = vdwg.mxu0
      %v1521 = vadd.f32 %v1311, %v1491
      %v1522 = vadd.f32 %v1312, %v1494
      %v1523 = vadd.f32 %v1313, %v1499
      %v1524 = vadd.f32 %v1314, %v1502
      %v1525 = vadd.f32 %v1315, %v1507
      %v1526 = vadd.f32 %v1316, %v1510
      %v1527 = vadd.f32 %v1317, %v1515
      %v1528 = vadd.f32 %v1318, %v1518
      %s1529 = scalar_lea.vmem %s206, 16
      %v1530 = vld [vmem:[%s1529] sm:$0xf]
      %v1531 = vld [vmem:[%s1529 + $0x8] sm:$0xf]
      %v1532 = vld [vmem:[%s1529 + $0x10] sm:$0xf]
      %v1533 = vld [vmem:[%s1529 + $0x18] sm:$0xf]
      %v1534 = vld [vmem:[%s1529 + $0x20] sm:$0xf]
      %v1535 = vld [vmem:[%s1529 + $0x28] sm:$0xf]
      %v1536 = vld [vmem:[%s1529 + $0x30] sm:$0xf]
      %v1537 = vld [vmem:[%s1529 + $0x38] sm:$0xf]
      %s1538 = scalar_lea.vmem %s210, 384
      %v1539 = vld [vmem:[%s1538] sm:$0xf]
      %v1540 = vld [vmem:[%s1538 + $0x4] sm:$0xf]
      %v1541 = vld [vmem:[%s1538 + $0x8] sm:$0xf]
      %v1542 = vld [vmem:[%s1538 + $0xc] sm:$0xf]
      %v1543 = vld [vmem:[%s1538 + $0x10] sm:$0xf]
      %v1544 = vld [vmem:[%s1538 + $0x14] sm:$0xf]
      %v1545 = vld [vmem:[%s1538 + $0x18] sm:$0xf]
      %v1546 = vld [vmem:[%s1538 + $0x1c] sm:$0xf]
      %v1547 = vld [vmem:[%s1538 + $0x20] sm:$0xf]
      %v1548 = vld [vmem:[%s1538 + $0x24] sm:$0xf]
      %v1549 = vld [vmem:[%s1538 + $0x28] sm:$0xf]
      %v1550 = vld [vmem:[%s1538 + $0x2c] sm:$0xf]
      %v1551 = vld [vmem:[%s1538 + $0x30] sm:$0xf]
      %v1552 = vld [vmem:[%s1538 + $0x34] sm:$0xf]
      %v1553 = vld [vmem:[%s1538 + $0x38] sm:$0xf]
      %v1554 = vld [vmem:[%s1538 + $0x3c] sm:$0xf]
      %v1563 = vunpack.c.l.b16 %v1530
      %v1564 = vunpack.c.l.b16 %v1531
      %v1565 = vunpack.c.l.b16 %v1532
      %v1566 = vunpack.c.l.b16 %v1533
      %v1567 = vunpack.c.l.b16 %v1534
      %v1568 = vunpack.c.l.b16 %v1535
      %v1569 = vunpack.c.l.b16 %v1536
      %v1570 = vunpack.c.l.b16 %v1537
      %v1571 = vpack.c.b16 %v1564, %v1563
      %v1572 = vpack.c.b16 %v1566, %v1565
      %v1573 = vpack.c.b16 %v1568, %v1567
      %v1574 = vpack.c.b16 %v1570, %v1569
      %v1595 = vunpack.c.l.b16 %v1539
      %v1596 = vunpack.c.l.b16 %v1540
      %v1597 = vunpack.c.l.b16 %v1541
      %v1598 = vunpack.c.l.b16 %v1542
      %v1599 = vunpack.c.l.b16 %v1543
      %v1600 = vunpack.c.l.b16 %v1544
      %v1601 = vunpack.c.l.b16 %v1545
      %v1602 = vunpack.c.l.b16 %v1546
      %v1603 = vunpack.c.l.b16 %v1547
      %v1604 = vunpack.c.l.b16 %v1548
      %v1605 = vunpack.c.l.b16 %v1549
      %v1606 = vunpack.c.l.b16 %v1550
      %v1607 = vunpack.c.l.b16 %v1551
      %v1608 = vunpack.c.l.b16 %v1552
      %v1609 = vunpack.c.l.b16 %v1553
      %v1610 = vunpack.c.l.b16 %v1554
      %v1611 = vpack.c.b16 %v1596, %v1595
      %v1612 = vpack.c.b16 %v1598, %v1597
      %v1613 = vpack.c.b16 %v1600, %v1599
      %v1614 = vpack.c.b16 %v1602, %v1601
      %v1615 = vpack.c.b16 %v1604, %v1603
      %v1616 = vpack.c.b16 %v1606, %v1605
      %v1617 = vpack.c.b16 %v1608, %v1607
      %v1618 = vpack.c.b16 %v1610, %v1609
      %1627 = vmatprep.subr.bf16.mxu0 0
      %1628 = vmatpush1.bf16.msra.mxu0 %v1618
      %1629 = vmatprep.subr.bf16.mxu0 0
      %1630 = vmatpush1.bf16.msra.mxu0 %v1617
      %1631 = vmatprep.subr.bf16.mxu0 0
      %1632 = vmatpush1.bf16.msra.mxu0 %v1616
      %1633 = vmatprep.subr.bf16.mxu0 0
      %1634 = vmatpush1.bf16.msra.mxu0 %v1615
      %1635 = vmatprep.subr.bf16.mxu0 0
      %1636 = vmatpush1.bf16.msra.mxu0 %v1614
      %1637 = vmatprep.subr.bf16.mxu0 0
      %1638 = vmatpush1.bf16.msra.mxu0 %v1613
      %1639 = vmatprep.subr.bf16.mxu0 0
      %1640 = vmatpush1.bf16.msra.mxu0 %v1612
      %1641 = vmatprep.subr.bf16.mxu0 0
      %1642 = vmatpush1.bf16.msra.mxu0 %v1611
      %1643 = vmatprep.subr.bf16.mxu0 0
      %1644 = vmatpush2.bf16.msra.mxu0 0
      %1645 = vmatprep.subr.bf16.mxu0 0
      %1646 = vmatpush2.bf16.msra.mxu0 0
      %1647 = vmatprep.subr.bf16.mxu0 0
      %1648 = vmatpush2.bf16.msra.mxu0 0
      %1649 = vmatprep.subr.bf16.mxu0 0
      %1650 = vmatpush2.bf16.msra.mxu0 0
      %1651 = vmatprep.subr.bf16.mxu0 0
      %1652 = vmatpush2.bf16.msra.mxu0 0
      %1653 = vmatprep.subr.bf16.mxu0 0
      %1654 = vmatpush2.bf16.msra.mxu0 0
      %1655 = vmatprep.subr.bf16.mxu0 0
      %1656 = vmatpush2.bf16.msra.mxu0 0
      %1657 = vmatprep.subr.bf16.mxu0 0
      %1658 = vmatpush2.bf16.msra.mxu0 0
      %1659 = vmatprep.mubr.bf16.mxu0 0
      %1660 = vmatmul.mubr.bf16.gmra.mxu0 %v1571
      %v1661 = vpop.f32.mrf.mxu0
      %v1662 = vadd.f32 0.0, %v1661
      %v1663 = vpop.f32.mrf.mxu0
      %v1664 = vpop.f32.mrf.mxu0
      %v1665 = vadd.f32 0.0, %v1664
      %v1666 = vpop.f32.mrf.mxu0
      %1667 = vmatprep.mubr.bf16.mxu0 0
      %1668 = vmatmul.mubr.bf16.gmra.mxu0 %v1572
      %v1669 = vpop.f32.mrf.mxu0
      %v1670 = vadd.f32 0.0, %v1669
      %v1671 = vpop.f32.mrf.mxu0
      %v1672 = vpop.f32.mrf.mxu0
      %v1673 = vadd.f32 0.0, %v1672
      %v1674 = vpop.f32.mrf.mxu0
      %1675 = vmatprep.mubr.bf16.mxu0 0
      %1676 = vmatmul.mubr.bf16.gmra.mxu0 %v1573
      %v1677 = vpop.f32.mrf.mxu0
      %v1678 = vadd.f32 0.0, %v1677
      %v1679 = vpop.f32.mrf.mxu0
      %v1680 = vpop.f32.mrf.mxu0
      %v1681 = vadd.f32 0.0, %v1680
      %v1682 = vpop.f32.mrf.mxu0
      %1683 = vmatprep.mubr.bf16.mxu0 0
      %1684 = vmatmul.mubr.bf16.gmra.mxu0 %v1574
      %v1685 = vpop.f32.mrf.mxu0
      %v1686 = vadd.f32 0.0, %v1685
      %v1687 = vpop.f32.mrf.mxu0
      %v1688 = vpop.f32.mrf.mxu0
      %v1689 = vadd.f32 0.0, %v1688
      %v1690 = vpop.f32.mrf.mxu0
      %1691 = vdwg.mxu0
      %v1692 = vadd.f32 %v1521, %v1662
      %v1693 = vadd.f32 %v1522, %v1665
      %v1694 = vadd.f32 %v1523, %v1670
      %v1695 = vadd.f32 %v1524, %v1673
      %v1696 = vadd.f32 %v1525, %v1678
      %v1697 = vadd.f32 %v1526, %v1681
      %v1698 = vadd.f32 %v1527, %v1686
      %v1699 = vadd.f32 %v1528, %v1689
      %v1700 = vld [vmem:[%s1529] sm:$0xf]
      %v1701 = vld [vmem:[%s1529 + $0x4] sm:$0x1]
      %v1702 = vld [vmem:[%s1529 + $0x8] sm:$0xf]
      %v1703 = vld [vmem:[%s1529 + $0xc] sm:$0x1]
      %v1704 = vld [vmem:[%s1529 + $0x10] sm:$0xf]
      %v1705 = vld [vmem:[%s1529 + $0x14] sm:$0x1]
      %v1706 = vld [vmem:[%s1529 + $0x18] sm:$0xf]
      %v1707 = vld [vmem:[%s1529 + $0x1c] sm:$0x1]
      %v1708 = vld [vmem:[%s1529 + $0x20] sm:$0xf]
      %v1709 = vld [vmem:[%s1529 + $0x24] sm:$0x1]
      %v1710 = vld [vmem:[%s1529 + $0x28] sm:$0xf]
      %v1711 = vld [vmem:[%s1529 + $0x2c] sm:$0x1]
      %v1712 = vld [vmem:[%s1529 + $0x30] sm:$0xf]
      %v1713 = vld [vmem:[%s1529 + $0x34] sm:$0x1]
      %v1714 = vld [vmem:[%s1529 + $0x38] sm:$0xf]
      %v1715 = vld [vmem:[%s1529 + $0x3c] sm:$0x1]
      %v1717 = vshrl.u32 %v1700, 16
      %v1719 = vrot.slane %v1717, 4
      %v1720 = vshll.u32 %v1700, 16
      %v1722 = vrot.slane %v1720, 5
      %v1723 = vor.u32 %v1719, %v1722
      %v1724 = vrot.slane %v1723, 4
      %v1726 = vshll.u32 %v1701, 16
      %v1728 = vrot.slane %v1726, 5
      %v1729 = vsel %vm257, %v1724, %v1728
      %v1731 = vshrl.u32 %v1702, 16
      %v1733 = vrot.slane %v1731, 4
      %v1734 = vshll.u32 %v1702, 16
      %v1736 = vrot.slane %v1734, 5
      %v1737 = vor.u32 %v1733, %v1736
      %v1738 = vrot.slane %v1737, 4
      %v1740 = vshll.u32 %v1703, 16
      %v1742 = vrot.slane %v1740, 5
      %v1743 = vsel %vm257, %v1738, %v1742
      %v1745 = vshrl.u32 %v1704, 16
      %v1747 = vrot.slane %v1745, 4
      %v1748 = vshll.u32 %v1704, 16
      %v1750 = vrot.slane %v1748, 5
      %v1751 = vor.u32 %v1747, %v1750
      %v1752 = vrot.slane %v1751, 4
      %v1754 = vshll.u32 %v1705, 16
      %v1756 = vrot.slane %v1754, 5
      %v1757 = vsel %vm257, %v1752, %v1756
      %v1759 = vshrl.u32 %v1706, 16
      %v1761 = vrot.slane %v1759, 4
      %v1762 = vshll.u32 %v1706, 16
      %v1764 = vrot.slane %v1762, 5
      %v1765 = vor.u32 %v1761, %v1764
      %v1766 = vrot.slane %v1765, 4
      %v1768 = vshll.u32 %v1707, 16
      %v1770 = vrot.slane %v1768, 5
      %v1771 = vsel %vm257, %v1766, %v1770
      %v1773 = vshrl.u32 %v1708, 16
      %v1775 = vrot.slane %v1773, 4
      %v1776 = vshll.u32 %v1708, 16
      %v1778 = vrot.slane %v1776, 5
      %v1779 = vor.u32 %v1775, %v1778
      %v1780 = vrot.slane %v1779, 4
      %v1782 = vshll.u32 %v1709, 16
      %v1784 = vrot.slane %v1782, 5
      %v1785 = vsel %vm257, %v1780, %v1784
      %v1787 = vshrl.u32 %v1710, 16
      %v1789 = vrot.slane %v1787, 4
      %v1790 = vshll.u32 %v1710, 16
      %v1792 = vrot.slane %v1790, 5
      %v1793 = vor.u32 %v1789, %v1792
      %v1794 = vrot.slane %v1793, 4
      %v1796 = vshll.u32 %v1711, 16
      %v1798 = vrot.slane %v1796, 5
      %v1799 = vsel %vm257, %v1794, %v1798
      %v1801 = vshrl.u32 %v1712, 16
      %v1803 = vrot.slane %v1801, 4
      %v1804 = vshll.u32 %v1712, 16
      %v1806 = vrot.slane %v1804, 5
      %v1807 = vor.u32 %v1803, %v1806
      %v1808 = vrot.slane %v1807, 4
      %v1810 = vshll.u32 %v1713, 16
      %v1812 = vrot.slane %v1810, 5
      %v1813 = vsel %vm257, %v1808, %v1812
      %v1815 = vshrl.u32 %v1714, 16
      %v1817 = vrot.slane %v1815, 4
      %v1818 = vshll.u32 %v1714, 16
      %v1820 = vrot.slane %v1818, 5
      %v1821 = vor.u32 %v1817, %v1820
      %v1822 = vrot.slane %v1821, 4
      %v1824 = vshll.u32 %v1715, 16
      %v1826 = vrot.slane %v1824, 5
      %v1827 = vsel %vm257, %v1822, %v1826
      %s1828 = scalar_lea.vmem %s210, 448
      %v1829 = vld [vmem:[%s1828] sm:$0xf]
      %v1830 = vld [vmem:[%s1828 + $0x4] sm:$0xf]
      %v1831 = vld [vmem:[%s1828 + $0x8] sm:$0xf]
      %v1832 = vld [vmem:[%s1828 + $0xc] sm:$0xf]
      %v1833 = vld [vmem:[%s1828 + $0x10] sm:$0xf]
      %v1834 = vld [vmem:[%s1828 + $0x14] sm:$0xf]
      %v1835 = vld [vmem:[%s1828 + $0x18] sm:$0xf]
      %v1836 = vld [vmem:[%s1828 + $0x1c] sm:$0xf]
      %v1837 = vld [vmem:[%s1828 + $0x20] sm:$0xf]
      %v1838 = vld [vmem:[%s1828 + $0x24] sm:$0xf]
      %v1839 = vld [vmem:[%s1828 + $0x28] sm:$0xf]
      %v1840 = vld [vmem:[%s1828 + $0x2c] sm:$0xf]
      %v1841 = vld [vmem:[%s1828 + $0x30] sm:$0xf]
      %v1842 = vld [vmem:[%s1828 + $0x34] sm:$0xf]
      %v1843 = vld [vmem:[%s1828 + $0x38] sm:$0xf]
      %v1844 = vld [vmem:[%s1828 + $0x3c] sm:$0xf]
      %v1845 = vunpack.c.l.b16 %v1729
      %v1846 = vunpack.c.l.b16 %v1743
      %v1847 = vunpack.c.l.b16 %v1757
      %v1848 = vunpack.c.l.b16 %v1771
      %v1849 = vunpack.c.l.b16 %v1785
      %v1850 = vunpack.c.l.b16 %v1799
      %v1851 = vunpack.c.l.b16 %v1813
      %v1852 = vunpack.c.l.b16 %v1827
      %v1853 = vpack.c.b16 %v1846, %v1845
      %v1854 = vpack.c.b16 %v1848, %v1847
      %v1855 = vpack.c.b16 %v1850, %v1849
      %v1856 = vpack.c.b16 %v1852, %v1851
      %v1877 = vunpack.c.l.b16 %v1829
      %v1878 = vunpack.c.l.b16 %v1830
      %v1879 = vunpack.c.l.b16 %v1831
      %v1880 = vunpack.c.l.b16 %v1832
      %v1881 = vunpack.c.l.b16 %v1833
      %v1882 = vunpack.c.l.b16 %v1834
      %v1883 = vunpack.c.l.b16 %v1835
      %v1884 = vunpack.c.l.b16 %v1836
      %v1885 = vunpack.c.l.b16 %v1837
      %v1886 = vunpack.c.l.b16 %v1838
      %v1887 = vunpack.c.l.b16 %v1839
      %v1888 = vunpack.c.l.b16 %v1840
      %v1889 = vunpack.c.l.b16 %v1841
      %v1890 = vunpack.c.l.b16 %v1842
      %v1891 = vunpack.c.l.b16 %v1843
      %v1892 = vunpack.c.l.b16 %v1844
      %v1893 = vpack.c.b16 %v1878, %v1877
      %v1894 = vpack.c.b16 %v1880, %v1879
      %v1895 = vpack.c.b16 %v1882, %v1881
      %v1896 = vpack.c.b16 %v1884, %v1883
      %v1897 = vpack.c.b16 %v1886, %v1885
      %v1898 = vpack.c.b16 %v1888, %v1887
      %v1899 = vpack.c.b16 %v1890, %v1889
      %v1900 = vpack.c.b16 %v1892, %v1891
      %1909 = vmatprep.subr.bf16.mxu0 0
      %1910 = vmatpush1.bf16.msra.mxu0 %v1900
      %1911 = vmatprep.subr.bf16.mxu0 0
      %1912 = vmatpush1.bf16.msra.mxu0 %v1899
      %1913 = vmatprep.subr.bf16.mxu0 0
      %1914 = vmatpush1.bf16.msra.mxu0 %v1898
      %1915 = vmatprep.subr.bf16.mxu0 0
      %1916 = vmatpush1.bf16.msra.mxu0 %v1897
      %1917 = vmatprep.subr.bf16.mxu0 0
      %1918 = vmatpush1.bf16.msra.mxu0 %v1896
      %1919 = vmatprep.subr.bf16.mxu0 0
      %1920 = vmatpush1.bf16.msra.mxu0 %v1895
      %1921 = vmatprep.subr.bf16.mxu0 0
      %1922 = vmatpush1.bf16.msra.mxu0 %v1894
      %1923 = vmatprep.subr.bf16.mxu0 0
      %1924 = vmatpush1.bf16.msra.mxu0 %v1893
      %1925 = vmatprep.subr.bf16.mxu0 0
      %1926 = vmatpush2.bf16.msra.mxu0 0
      %1927 = vmatprep.subr.bf16.mxu0 0
      %1928 = vmatpush2.bf16.msra.mxu0 0
      %1929 = vmatprep.subr.bf16.mxu0 0
      %1930 = vmatpush2.bf16.msra.mxu0 0
      %1931 = vmatprep.subr.bf16.mxu0 0
      %1932 = vmatpush2.bf16.msra.mxu0 0
      %1933 = vmatprep.subr.bf16.mxu0 0
      %1934 = vmatpush2.bf16.msra.mxu0 0
      %1935 = vmatprep.subr.bf16.mxu0 0
      %1936 = vmatpush2.bf16.msra.mxu0 0
      %1937 = vmatprep.subr.bf16.mxu0 0
      %1938 = vmatpush2.bf16.msra.mxu0 0
      %1939 = vmatprep.subr.bf16.mxu0 0
      %1940 = vmatpush2.bf16.msra.mxu0 0
      %1941 = vmatprep.mubr.bf16.mxu0 0
      %1942 = vmatmul.mubr.bf16.gmra.mxu0 %v1853
      %v1943 = vpop.f32.mrf.mxu0
      %v1944 = vadd.f32 0.0, %v1943
      %v1945 = vpop.f32.mrf.mxu0
      %v1946 = vpop.f32.mrf.mxu0
      %v1947 = vadd.f32 0.0, %v1946
      %v1948 = vpop.f32.mrf.mxu0
      %1949 = vmatprep.mubr.bf16.mxu0 0
      %1950 = vmatmul.mubr.bf16.gmra.mxu0 %v1854
      %v1951 = vpop.f32.mrf.mxu0
      %v1952 = vadd.f32 0.0, %v1951
      %v1953 = vpop.f32.mrf.mxu0
      %v1954 = vpop.f32.mrf.mxu0
      %v1955 = vadd.f32 0.0, %v1954
      %v1956 = vpop.f32.mrf.mxu0
      %1957 = vmatprep.mubr.bf16.mxu0 0
      %1958 = vmatmul.mubr.bf16.gmra.mxu0 %v1855
      %v1959 = vpop.f32.mrf.mxu0
      %v1960 = vadd.f32 0.0, %v1959
      %v1961 = vpop.f32.mrf.mxu0
      %v1962 = vpop.f32.mrf.mxu0
      %v1963 = vadd.f32 0.0, %v1962
      %v1964 = vpop.f32.mrf.mxu0
      %1965 = vmatprep.mubr.bf16.mxu0 0
      %1966 = vmatmul.mubr.bf16.gmra.mxu0 %v1856
      %v1967 = vpop.f32.mrf.mxu0
      %v1968 = vadd.f32 0.0, %v1967
      %v1969 = vpop.f32.mrf.mxu0
      %v1970 = vpop.f32.mrf.mxu0
      %v1971 = vadd.f32 0.0, %v1970
      %v1972 = vpop.f32.mrf.mxu0
      %1973 = vdwg.mxu0
      %v1974 = vadd.f32 %v1692, %v1944
      %v1975 = vadd.f32 %v1693, %v1947
      %v1976 = vadd.f32 %v1694, %v1952
      %v1977 = vadd.f32 %v1695, %v1955
      %v1978 = vadd.f32 %v1696, %v1960
      %v1979 = vadd.f32 %v1697, %v1963
      %v1980 = vadd.f32 %v1698, %v1968
      %v1981 = vadd.f32 %v1699, %v1971
      %v1982 = vld [vmem:[%s1529] sm:$0xe]
      %v1983 = vld [vmem:[%s1529 + $0x8] sm:$0xe]
      %v1984 = vld [vmem:[%s1529 + $0x10] sm:$0xe]
      %v1985 = vld [vmem:[%s1529 + $0x18] sm:$0xe]
      %v1986 = vld [vmem:[%s1529 + $0x20] sm:$0xe]
      %v1987 = vld [vmem:[%s1529 + $0x28] sm:$0xe]
      %v1988 = vld [vmem:[%s1529 + $0x30] sm:$0xe]
      %v1989 = vld [vmem:[%s1529 + $0x38] sm:$0xe]
      %v2006 = vrot.slane %v1982, 5
      %v2007 = vrot.slane %v2006, 4
      %v2008 = vrot.slane %v1701, 5
      %v2009 = vsel %vm679, %v2007, %v2008
      %v2010 = vrot.slane %v1983, 5
      %v2011 = vrot.slane %v2010, 4
      %v2012 = vrot.slane %v1703, 5
      %v2013 = vsel %vm679, %v2011, %v2012
      %v2014 = vrot.slane %v1984, 5
      %v2015 = vrot.slane %v2014, 4
      %v2016 = vrot.slane %v1705, 5
      %v2017 = vsel %vm679, %v2015, %v2016
      %v2018 = vrot.slane %v1985, 5
      %v2019 = vrot.slane %v2018, 4
      %v2020 = vrot.slane %v1707, 5
      %v2021 = vsel %vm679, %v2019, %v2020
      %v2022 = vrot.slane %v1986, 5
      %v2023 = vrot.slane %v2022, 4
      %v2024 = vrot.slane %v1709, 5
      %v2025 = vsel %vm679, %v2023, %v2024
      %v2026 = vrot.slane %v1987, 5
      %v2027 = vrot.slane %v2026, 4
      %v2028 = vrot.slane %v1711, 5
      %v2029 = vsel %vm679, %v2027, %v2028
      %v2030 = vrot.slane %v1988, 5
      %v2031 = vrot.slane %v2030, 4
      %v2032 = vrot.slane %v1713, 5
      %v2033 = vsel %vm679, %v2031, %v2032
      %v2034 = vrot.slane %v1989, 5
      %v2035 = vrot.slane %v2034, 4
      %v2036 = vrot.slane %v1715, 5
      %v2037 = vsel %vm679, %v2035, %v2036
      %s2038 = scalar_lea.vmem %s210, 512
      %v2039 = vld [vmem:[%s2038] sm:$0xf]
      %v2040 = vld [vmem:[%s2038 + $0x4] sm:$0xf]
      %v2041 = vld [vmem:[%s2038 + $0x8] sm:$0xf]
      %v2042 = vld [vmem:[%s2038 + $0xc] sm:$0xf]
      %v2043 = vld [vmem:[%s2038 + $0x10] sm:$0xf]
      %v2044 = vld [vmem:[%s2038 + $0x14] sm:$0xf]
      %v2045 = vld [vmem:[%s2038 + $0x18] sm:$0xf]
      %v2046 = vld [vmem:[%s2038 + $0x1c] sm:$0xf]
      %v2047 = vld [vmem:[%s2038 + $0x20] sm:$0xf]
      %v2048 = vld [vmem:[%s2038 + $0x24] sm:$0xf]
      %v2049 = vld [vmem:[%s2038 + $0x28] sm:$0xf]
      %v2050 = vld [vmem:[%s2038 + $0x2c] sm:$0xf]
      %v2051 = vld [vmem:[%s2038 + $0x30] sm:$0xf]
      %v2052 = vld [vmem:[%s2038 + $0x34] sm:$0xf]
      %v2053 = vld [vmem:[%s2038 + $0x38] sm:$0xf]
      %v2054 = vld [vmem:[%s2038 + $0x3c] sm:$0xf]
      %v2055 = vunpack.c.l.b16 %v2009
      %v2056 = vunpack.c.l.b16 %v2013
      %v2057 = vunpack.c.l.b16 %v2017
      %v2058 = vunpack.c.l.b16 %v2021
      %v2059 = vunpack.c.l.b16 %v2025
      %v2060 = vunpack.c.l.b16 %v2029
      %v2061 = vunpack.c.l.b16 %v2033
      %v2062 = vunpack.c.l.b16 %v2037
      %v2063 = vpack.c.b16 %v2056, %v2055
      %v2064 = vpack.c.b16 %v2058, %v2057
      %v2065 = vpack.c.b16 %v2060, %v2059
      %v2066 = vpack.c.b16 %v2062, %v2061
      %v2087 = vunpack.c.l.b16 %v2039
      %v2088 = vunpack.c.l.b16 %v2040
      %v2089 = vunpack.c.l.b16 %v2041
      %v2090 = vunpack.c.l.b16 %v2042
      %v2091 = vunpack.c.l.b16 %v2043
      %v2092 = vunpack.c.l.b16 %v2044
      %v2093 = vunpack.c.l.b16 %v2045
      %v2094 = vunpack.c.l.b16 %v2046
      %v2095 = vunpack.c.l.b16 %v2047
      %v2096 = vunpack.c.l.b16 %v2048
      %v2097 = vunpack.c.l.b16 %v2049
      %v2098 = vunpack.c.l.b16 %v2050
      %v2099 = vunpack.c.l.b16 %v2051
      %v2100 = vunpack.c.l.b16 %v2052
      %v2101 = vunpack.c.l.b16 %v2053
      %v2102 = vunpack.c.l.b16 %v2054
      %v2103 = vpack.c.b16 %v2088, %v2087
      %v2104 = vpack.c.b16 %v2090, %v2089
      %v2105 = vpack.c.b16 %v2092, %v2091
      %v2106 = vpack.c.b16 %v2094, %v2093
      %v2107 = vpack.c.b16 %v2096, %v2095
      %v2108 = vpack.c.b16 %v2098, %v2097
      %v2109 = vpack.c.b16 %v2100, %v2099
      %v2110 = vpack.c.b16 %v2102, %v2101
      %2119 = vmatprep.subr.bf16.mxu0 0
      %2120 = vmatpush1.bf16.msra.mxu0 %v2110
      %2121 = vmatprep.subr.bf16.mxu0 0
      %2122 = vmatpush1.bf16.msra.mxu0 %v2109
      %2123 = vmatprep.subr.bf16.mxu0 0
      %2124 = vmatpush1.bf16.msra.mxu0 %v2108
      %2125 = vmatprep.subr.bf16.mxu0 0
      %2126 = vmatpush1.bf16.msra.mxu0 %v2107
      %2127 = vmatprep.subr.bf16.mxu0 0
      %2128 = vmatpush1.bf16.msra.mxu0 %v2106
      %2129 = vmatprep.subr.bf16.mxu0 0
      %2130 = vmatpush1.bf16.msra.mxu0 %v2105
      %2131 = vmatprep.subr.bf16.mxu0 0
      %2132 = vmatpush1.bf16.msra.mxu0 %v2104
      %2133 = vmatprep.subr.bf16.mxu0 0
      %2134 = vmatpush1.bf16.msra.mxu0 %v2103
      %2135 = vmatprep.subr.bf16.mxu0 0
      %2136 = vmatpush2.bf16.msra.mxu0 0
      %2137 = vmatprep.subr.bf16.mxu0 0
      %2138 = vmatpush2.bf16.msra.mxu0 0
      %2139 = vmatprep.subr.bf16.mxu0 0
      %2140 = vmatpush2.bf16.msra.mxu0 0
      %2141 = vmatprep.subr.bf16.mxu0 0
      %2142 = vmatpush2.bf16.msra.mxu0 0
      %2143 = vmatprep.subr.bf16.mxu0 0
      %2144 = vmatpush2.bf16.msra.mxu0 0
      %2145 = vmatprep.subr.bf16.mxu0 0
      %2146 = vmatpush2.bf16.msra.mxu0 0
      %2147 = vmatprep.subr.bf16.mxu0 0
      %2148 = vmatpush2.bf16.msra.mxu0 0
      %2149 = vmatprep.subr.bf16.mxu0 0
      %2150 = vmatpush2.bf16.msra.mxu0 0
      %2151 = vmatprep.mubr.bf16.mxu0 0
      %2152 = vmatmul.mubr.bf16.gmra.mxu0 %v2063
      %v2153 = vpop.f32.mrf.mxu0
      %v2154 = vadd.f32 0.0, %v2153
      %v2155 = vpop.f32.mrf.mxu0
      %v2156 = vpop.f32.mrf.mxu0
      %v2157 = vadd.f32 0.0, %v2156
      %v2158 = vpop.f32.mrf.mxu0
      %2159 = vmatprep.mubr.bf16.mxu0 0
      %2160 = vmatmul.mubr.bf16.gmra.mxu0 %v2064
      %v2161 = vpop.f32.mrf.mxu0
      %v2162 = vadd.f32 0.0, %v2161
      %v2163 = vpop.f32.mrf.mxu0
      %v2164 = vpop.f32.mrf.mxu0
      %v2165 = vadd.f32 0.0, %v2164
      %v2166 = vpop.f32.mrf.mxu0
      %2167 = vmatprep.mubr.bf16.mxu0 0
      %2168 = vmatmul.mubr.bf16.gmra.mxu0 %v2065
      %v2169 = vpop.f32.mrf.mxu0
      %v2170 = vadd.f32 0.0, %v2169
      %v2171 = vpop.f32.mrf.mxu0
      %v2172 = vpop.f32.mrf.mxu0
      %v2173 = vadd.f32 0.0, %v2172
      %v2174 = vpop.f32.mrf.mxu0
      %2175 = vmatprep.mubr.bf16.mxu0 0
      %2176 = vmatmul.mubr.bf16.gmra.mxu0 %v2066
      %v2177 = vpop.f32.mrf.mxu0
      %v2178 = vadd.f32 0.0, %v2177
      %v2179 = vpop.f32.mrf.mxu0
      %v2180 = vpop.f32.mrf.mxu0
      %v2181 = vadd.f32 0.0, %v2180
      %v2182 = vpop.f32.mrf.mxu0
      %2183 = vdwg.mxu0
      %v2184 = vadd.f32 %v1974, %v2154
      %v2185 = vadd.f32 %v1975, %v2157
      %v2186 = vadd.f32 %v1976, %v2162
      %v2187 = vadd.f32 %v1977, %v2165
      %v2188 = vadd.f32 %v1978, %v2170
      %v2189 = vadd.f32 %v1979, %v2173
      %v2190 = vadd.f32 %v1980, %v2178
      %v2191 = vadd.f32 %v1981, %v2181
      %v2192 = vld [vmem:[%s213] sm:$0x1]
      %v2194 = vlaneseq
      %v2195 = vshrl.u32 %v2194, 7
      %v2196 = vsub.s32 0, %v2195
      %v2197 = vrot.slane %v2192, %v2196
      %v2199 = vadd.f32 %v2184, %v2197
      %v2200 = vadd.f32 %v2185, %v2197
      %v2201 = vadd.f32 %v2186, %v2197
      %v2202 = vadd.f32 %v2187, %v2197
      %v2203 = vadd.f32 %v2188, %v2197
      %v2204 = vadd.f32 %v2189, %v2197
      %v2205 = vadd.f32 %v2190, %v2197
      %v2206 = vadd.f32 %v2191, %v2197
      %v2207 = vmul.f32 %v2199, 0.1
      %v2208 = vmul.f32 %v2200, 0.1
      %v2209 = vmul.f32 %v2201, 0.1
      %v2210 = vmul.f32 %v2202, 0.1
      %v2211 = vmul.f32 %v2203, 0.1
      %v2212 = vmul.f32 %v2204, 0.1
      %v2213 = vmul.f32 %v2205, 0.1
      %v2214 = vmul.f32 %v2206, 0.1
      %v2215 = vmax.f32 %v2199, %v2207
      %v2216 = vmax.f32 %v2200, %v2208
      %v2217 = vmax.f32 %v2201, %v2209
      %v2218 = vmax.f32 %v2202, %v2210
      %v2219 = vmax.f32 %v2203, %v2211
      %v2220 = vmax.f32 %v2204, %v2212
      %v2221 = vmax.f32 %v2205, %v2213
      %v2222 = vmax.f32 %v2206, %v2214
      %2223 = vst [vmem:[%s221] sm:$0xff] %v2215
      %2224 = vst [vmem:[%s221 + $0x8] sm:$0xff] %v2216
      %2225 = vst [vmem:[%s221 + $0x10] sm:$0xff] %v2217
      %2226 = vst [vmem:[%s221 + $0x18] sm:$0xff] %v2218
      %2227 = vst [vmem:[%s221 + $0x20] sm:$0xff] %v2219
      %2228 = vst [vmem:[%s221 + $0x28] sm:$0xff] %v2220
      %2229 = vst [vmem:[%s221 + $0x30] sm:$0xff] %v2221
      %2230 = vst [vmem:[%s221 + $0x38] sm:$0xff] %v2222
      %p2231 = scmp.lt.s32.totalorder %s18, 1
      %s2232 = scalar_select %p2231, %s18, 1
      %p2233 = scmp.lt.s32.totalorder %s19, 0
      %s2234 = scalar_select %p2233, %s19, 0
      %s2235 = smul.addr %s2232, 8
      %s2236 = sadd.s32 %s2234, %s2235
      %s2237 = smul.addr %s2236, 8
      %s2238 = scalar_lea.vmem %s3, %s2237
      // Predicated region
      $region33: #{down_block_forward.3} parent=31 // pred_check
        %p2239 = pneg %p124
      $region34: #{down_block_forward.3} parent=31 // pred_check_branch
        %2241 = sbr.rel (%p2239) target = $region36
      $region35: #{down_block_forward.3} parent=31 // pred_region
        _
      $region36: #{down_block_forward.3} parent=31 // pred_fallthru
        _
    $region32: #{down_block_forward.3} parent=5 // pred_fallthru
      _
    %p2242 = scmp.le.s32.totalorder 2, %s9
    // Predicated region
    $region37: #{down_block_forward.3} parent=5 // pred_check
      %p2243 = pneg %p2242
    $region38: #{down_block_forward.3} parent=5 // pred_check_branch
      %2245 = sbr.rel (%p2243) target = $region40
    $region39: #{down_block_forward.3} parent=5 // pred_region
      %s2246 = ssub.s32 %s9, 2
      // Predicated region
      $region41: #{down_block_forward.3} parent=39 // pred_check
        %p2247 = pneg %p130
      $region42: #{down_block_forward.3} parent=39 // pred_check_branch
        %2249 = sbr.rel (%p2247) target = $region44
      $region43: #{down_block_forward.3} parent=39 // pred_region
        %p2250 = scmp.lt.s32.totalorder %s20, 1
        %s2251 = scalar_select %p2250, %s20, 1
        %p2252 = scmp.lt.s32.totalorder %s21, 0
        %s2253 = scalar_select %p2252, %s21, 0
        %s2254 = smul.addr %s2251, 8
        %s2255 = sadd.s32 %s2253, %s2254
        %s2256 = smul.addr %s2255, 8
        %s2257 = scalar_lea.vmem %s3, %s2256
      $region44: #{down_block_forward.3} parent=39 // pred_fallthru
        _
    $region40: #{down_block_forward.3} parent=5 // pred_fallthru
      _
  $region6: #{down_block_forward.3} parent=0 // loop_footer
    %s13 = sadd.s32 1, %s9
  $region7: #{down_block_forward.3} parent=0 // loop_footer_branch
    %8 = sbr.rel target = $region3
  $region8: #{down_block_forward.3} parent=0 // loop_exit
    _

</llo_original>
